<compile_context>
chip_gen: v5e
topology: v5e:2x2
jax: 0.10.0
libtpu: 0.0.40
codegen_flags: <defaults>
</compile_context>

<pallas_src>
import functools

import jax
import jax.numpy as jnp
from jax.experimental import pallas as pl
from jax.experimental.pallas import tpu as pltpu


def _round_up(v, m):
    return (v + m - 1) // m * m


def _fused_gcn_kernel(amap_ref, nz_ref, a_ref, xw1_ref, b1_ref, w2_ref, b2_ref,
                      o_ref, xw1c_ref, xw2c_ref, acc_ref, *, tm, num_k):
    layer = pl.program_id(0)   # 0: conv1 aggregation, 1: conv2 aggregation
    i = pl.program_id(1)       # row tile of A_hat / output
    k = pl.program_id(2)       # column tile of A_hat (reduction over nodes)

    k_row = pl.multiple_of(k * tm, tm)
    i_row = pl.multiple_of(i * tm, tm)
    is_l0 = layer == 0
    is_l1 = layer == 1

    # Cache the precomputed X@W1 tiles on their single HBM pass (layer 0, i==0);
    # the xw1 BlockSpec index is frozen for every other grid step.
    @pl.when(jnp.logical_and(is_l0, i == 0))
    def _():
        xw1c_ref[pl.ds(k_row, tm), :] = xw1_ref[...]

    # Zero the accumulators at the start of each reduction.
    @pl.when(jnp.logical_and(is_l0, k == 0))
    def _():
        acc_ref[...] = jnp.zeros_like(acc_ref)

    @pl.when(jnp.logical_and(is_l1, k == 0))
    def _():
        o_ref[...] = jnp.zeros_like(o_ref)

    # Hot loop: one bf16 MXU matmul per nonzero A_hat tile, f32 accumulation.
    # Empty tiles are skipped entirely (their DMA was already elided because the
    # a_hat index_map repeats the previous block index).
    nz = nz_ref[i * num_k + k] != 0

    @pl.when(jnp.logical_and(is_l0, nz))
    def _():
        acc_ref[...] += jnp.dot(a_ref[...], xw1c_ref[pl.ds(k_row, tm), :],
                                preferred_element_type=jnp.float32)

    @pl.when(jnp.logical_and(is_l1, nz))
    def _():
        o_ref[...] += jnp.dot(a_ref[...], xw2c_ref[pl.ds(k_row, tm), :],
                              preferred_element_type=jnp.float32)

    # Layer-0 finalize: bias + ReLU, then immediately project with W2 so the
    # layer-1 hot loop needs no projection (runs under layer-0's DMA slack).
    @pl.when(jnp.logical_and(is_l0, k == num_k - 1))
    def _():
        h = jnp.maximum(acc_ref[...] + b1_ref[...], 0.0).astype(jnp.bfloat16)
        xw2c_ref[pl.ds(i_row, tm), :] = jnp.dot(
            h, w2_ref[...], preferred_element_type=jnp.float32
        ).astype(xw2c_ref.dtype)

    # Layer-1 finalize: add bias in place (logits already accumulated in o_ref).
    @pl.when(jnp.logical_and(is_l1, k == num_k - 1))
    def _():
        o_ref[...] += b2_ref[...]


def normalized_adjacency(edge_index, num_nodes, n_pad):
    """Dense padded D^{-1/2}(A + remaining self loops)D^{-1/2} (PyG gcn_norm).

    Built directly at the padded size; padded rows/cols stay exactly zero.
    Self loops are added only for real nodes that do not already have one;
    duplicate edges sum (as in PyG).
    """
    src = edge_index[0]
    dst = edge_index[1]
    adj = jnp.zeros((n_pad, n_pad), jnp.float32).at[dst, src].add(1.0)
    real = jnp.arange(n_pad) < num_nodes
    diag = jnp.diagonal(adj)
    adj = adj + jnp.diag(jnp.where(jnp.logical_and(real, diag == 0.0), 1.0, 0.0))
    deg = adj.sum(axis=1)
    d_inv_sqrt = jnp.where(deg > 0.0, jax.lax.rsqrt(jnp.maximum(deg, 1e-12)), 0.0)
    return d_inv_sqrt[:, None] * adj * d_inv_sqrt[None, :]


def glorot(key, fan_in, fan_out):
    limit = jnp.sqrt(6.0 / (fan_in + fan_out))
    return jax.random.uniform(key, (fan_in, fan_out), jnp.float32, -limit, limit)


def gcn_forward(x, edge_index, params, *, tile=512):
    """Fused GCN forward: relu(A@X@W1+b1) -> A@h@W2+b2 in one pallas_call."""
    n, _ = x.shape
    hidden = params["w1"].shape[1]
    n_cls = params["w2"].shape[1]

    # Lane-dense padding: feature dims to 128, node dim to the tile size.
    dim_h = _round_up(hidden, 128)
    dim_o = _round_up(n_cls, 128)
    t = _round_up(min(tile, _round_up(n, 128)), 128)
    n_pad = _round_up(n, t)
    num_i = n_pad // t
    num_k = num_i

    # Normalized adjacency, built once at padded size, streamed as bf16.
    # TODO(synk): for very large graphs generate only the nonzero tiles.
    a_f32 = normalized_adjacency(edge_index, n, n_pad)
    a_pad = a_f32.astype(jnp.bfloat16)

    # Dense projection X @ W1 precomputed once outside the kernel (XLA matmul);
    # the kernel only streams/caches the (n_pad, dim_h) bf16 result.
    xw1 = x.astype(jnp.float32) @ params["w1"]
    xw1_pad = jnp.zeros((n_pad, dim_h), jnp.bfloat16).at[:n, :hidden].set(
        xw1.astype(jnp.bfloat16))

    b1 = jnp.zeros((1, dim_h), jnp.float32).at[0, :hidden].set(params["b1"])
    w2 = jnp.zeros((dim_h, dim_o), jnp.bfloat16).at[:hidden, :n_cls].set(
        params["w2"].astype(jnp.bfloat16))
    b2 = jnp.zeros((1, dim_o), jnp.float32).at[0, :n_cls].set(params["b2"])

    # Block-sparsity metadata (scalar-prefetched into SMEM, flattened 1-D):
    #   nz[i*num_k+k]   -> 1 iff A_hat tile (i, k) has any nonzero
    #   amap[i*num_k+k] -> block column to fetch; empty tiles repeat the nearest
    #                      nonzero index so Pallas elides the re-DMA.
    blk = jnp.abs(a_f32).reshape(num_i, t, num_k, t).max(axis=(1, 3)) > 0.0
    kk = jnp.arange(num_k, dtype=jnp.int32)[None, :]
    last_nz = jax.lax.cummax(jnp.where(blk, kk, -1), axis=1)
    first_nz = jnp.argmax(blk, axis=1).astype(jnp.int32)
    amap = jnp.where(last_nz >= 0, last_nz, first_nz[:, None])
    amap = amap.astype(jnp.int32).reshape(-1)
    nz = blk.astype(jnp.int32).reshape(-1)

    kernel = functools.partial(_fused_gcn_kernel, tm=t, num_k=num_k)

    # Rough VMEM budget: double-buffered input/output tiles + weights + the two
    # bf16 projected-feature caches + the layer-0 f32 accumulator.
    vmem_need = (2 * t * t * 2 + 2 * t * dim_h * 2 + 2 * t * dim_o * 4
                 + 2 * (dim_h * dim_o * 2 + dim_h * 4 + dim_o * 4)
                 + n_pad * dim_h * 2 + n_pad * dim_o * 2 + t * dim_h * 4)
    vmem_limit = min(64 * 1024 * 1024,
                     max(int(1.5 * vmem_need) + (2 << 20), 16 << 20))

    flops = (2 * n_pad * n_pad * (dim_h + dim_o)      # two A_hat aggregations
             + 2 * n_pad * dim_h * dim_o)             # h @ W2
    bytes_accessed = (2 * n_pad * n_pad * 2           # A_hat, once per layer
                      + n_pad * dim_h * 2             # X@W1, single pass
                      + dim_h * dim_o * 2             # W2
                      + n_pad * dim_o * 4)            # logits writeback

    out = pl.pallas_call(
        kernel,
        out_shape=jax.ShapeDtypeStruct((n_pad, dim_o), jnp.float32),
        grid_spec=pltpu.PrefetchScalarGridSpec(
            num_scalar_prefetch=2,
            grid=(2, num_i, num_k),
            in_specs=[
                # A_hat: data-dependent column index; empty tiles repeat the
                # previous nonzero index -> re-DMA skipped.
                pl.BlockSpec((t, t),
                             lambda l, i, k, amap, nz: (i, amap[i * num_k + k])),
                # X@W1: streamed once (layer 0, row tile 0), frozen otherwise.
                pl.BlockSpec((t, dim_h),
                             lambda l, i, k, amap, nz: (k * (l == 0) * (i == 0), 0)),
                pl.BlockSpec((1, dim_h), lambda l, i, k, amap, nz: (0, 0)),      # b1
                pl.BlockSpec((dim_h, dim_o), lambda l, i, k, amap, nz: (0, 0)),  # W2
                pl.BlockSpec((1, dim_o), lambda l, i, k, amap, nz: (0, 0)),      # b2
            ],
            # Frozen at block 0 during layer 0 (never written -> no dead HBM
            # writeback); VMEM-resident accumulator across k during layer 1.
            out_specs=pl.BlockSpec((t, dim_o),
                                   lambda l, i, k, amap, nz: (i * l, 0)),
            scratch_shapes=[
                pltpu.VMEM((n_pad, dim_h), jnp.bfloat16),  # cached X@W1
                pltpu.VMEM((n_pad, dim_o), jnp.bfloat16),  # cached h@W2
                pltpu.VMEM((t, dim_h), jnp.float32),       # layer-0 accumulator
            ],
        ),
        compiler_params=pltpu.CompilerParams(
            # Layer 1 consumes the per-core VMEM xw2 cache produced across all
            # of layer 0 -> the grid must run sequentially on one core.
            dimension_semantics=("arbitrary", "arbitrary", "arbitrary"),
            vmem_limit_bytes=vmem_limit,
        ),
        cost_estimate=pl.CostEstimate(
            flops=int(flops), transcendentals=0,
            bytes_accessed=int(bytes_accessed)),
    )(amap, nz, a_pad, xw1_pad, b1, w2, b2)

    return out[:n, :n_cls]


if __name__ == "__main__":
    key = jax.random.PRNGKey(0)
    k_x, k_e1, k_e2, k_w1, k_w2 = jax.random.split(key, 5)

    num_nodes = 200
    num_features = 16
    hidden_channels = 32
    num_classes = 4

    # Node features [N, F_in].
    x = jax.random.normal(k_x, (num_nodes, num_features), jnp.float32)

    # Two-community graph (nodes [0,128) and [128,200)): with a 128-node tile
    # the off-diagonal A_hat tiles are exactly zero, exercising the
    # block-sparse skip path at runtime.
    e1 = jax.random.randint(k_e1, (2, 300), 0, 128, jnp.int32)
    e2 = jax.random.randint(k_e2, (2, 120), 128, num_nodes, jnp.int32)
    edge_index = jnp.concatenate([e1, e2], axis=1)

    # Deterministic params (glorot weights, zero bias), mirroring GCNConv shapes.
    params = {
        "w1": glorot(k_w1, num_features, hidden_channels),
        "b1": jnp.zeros((hidden_channels,), jnp.float32),
        "w2": glorot(k_w2, hidden_channels, num_classes),
        "b2": jnp.zeros((num_classes,), jnp.float32),
    }

    out = gcn_forward(x, edge_index, params, tile=128)
    out = jax.block_until_ready(out)
    assert out.shape == (num_nodes, num_classes), out.shape

    # Pure-JAX f32 reference; loose tolerance since A_hat / X@W1 / W2 stream
    # in bf16 inside the kernel.
    a_hat = normalized_adjacency(edge_index, num_nodes, num_nodes)
    h = jnp.maximum(a_hat @ (x @ params["w1"]) + params["b1"], 0.0)
    ref = a_hat @ (h @ params["w2"]) + params["b2"]
    err = float(jnp.max(jnp.abs(out - ref)))
    assert err < 0.1 * (1.0 + float(jnp.max(jnp.abs(ref)))), err

    print("KERNEL_OK")
</pallas_src>

<mosaic_0001>
module attributes {stable_mosaic.version = 11 : i64} {
  func.func @_fused_gcn_kernel(%arg0: i32, %arg1: i32, %arg2: i32, %arg3: memref<4xi32, #tpu.memory_space<smem>>, %arg4: memref<4xi32, #tpu.memory_space<smem>>, %arg5: memref<128x128xbf16, #tpu.memory_space<vmem>>, %arg6: memref<128x128xbf16, #tpu.memory_space<vmem>>, %arg7: memref<1x128xf32, #tpu.memory_space<vmem>>, %arg8: memref<128x128xbf16, #tpu.memory_space<vmem>>, %arg9: memref<1x128xf32, #tpu.memory_space<vmem>>, %arg10: memref<128x128xf32, #tpu.memory_space<vmem>>, %arg11: memref<256x128xbf16, #tpu.memory_space<vmem>>, %arg12: memref<256x128xbf16, #tpu.memory_space<vmem>>, %arg13: memref<128x128xf32, #tpu.memory_space<vmem>>) attributes {dimension_semantics = [#tpu.dimension_semantics<arbitrary>, #tpu.dimension_semantics<arbitrary>, #tpu.dimension_semantics<arbitrary>], iteration_bounds = array<i64: 2, 2, 2>, scalar_prefetch = 2 : i64, scratch_operands = 3 : i64, tpu.core_type = #tpu.core_type<tc>, window_params = [{transform_indices = @transform_0, window_bounds = array<i64: 128, 128>}, {transform_indices = @transform_1, window_bounds = array<i64: 128, 128>}, {pipeline_mode = #tpu.pipeline_mode<synchronous>, transform_indices = @transform_2, window_bounds = array<i64: 1, 128>}, {pipeline_mode = #tpu.pipeline_mode<synchronous>, transform_indices = @transform_3, window_bounds = array<i64: 128, 128>}, {pipeline_mode = #tpu.pipeline_mode<synchronous>, transform_indices = @transform_4, window_bounds = array<i64: 1, 128>}, {transform_indices = @transform_5, window_bounds = array<i64: 128, 128>}]} {
    %c128_i32 = arith.constant 128 : i32
    %0 = arith.muli %arg2, %c128_i32 : i32
    %1 = tpu.assume_multiple %0, 128 : i32
    %c128_i32_0 = arith.constant 128 : i32
    %2 = arith.muli %arg1, %c128_i32_0 : i32
    %3 = tpu.assume_multiple %2, 128 : i32
    %c0_i32 = arith.constant 0 : i32
    %4 = arith.cmpi eq, %arg0, %c0_i32 : i32
    %c1_i32 = arith.constant 1 : i32
    %5 = arith.cmpi eq, %arg0, %c1_i32 : i32
    %c0_i32_1 = arith.constant 0 : i32
    %6 = arith.cmpi eq, %arg1, %c0_i32_1 : i32
    %7 = arith.andi %4, %6 : i1
    %8 = arith.extui %7 : i1 to i32
    %c0_i32_2 = arith.constant 0 : i32
    %9 = arith.cmpi ne, %8, %c0_i32_2 : i32
    scf.if %9 {
      %c0 = arith.constant 0 : index
      %c0_14 = arith.constant 0 : index
      %37 = vector.load %arg6[%c0, %c0_14] : memref<128x128xbf16, #tpu.memory_space<vmem>>, vector<128x128xbf16>
      %38 = arith.index_cast %1 : i32 to index
      %c0_15 = arith.constant 0 : index
      %39 = vector.load %arg11[%38, %c0_15] : memref<256x128xbf16, #tpu.memory_space<vmem>>, vector<128x128xbf16>
      tpu.vector_store %arg11[%38, %c0_15], %37 {strides = array<i32>} : memref<256x128xbf16, #tpu.memory_space<vmem>>, vector<128x128xbf16>,
    } else {
    }
    %c0_i32_3 = arith.constant 0 : i32
    %10 = arith.cmpi eq, %arg2, %c0_i32_3 : i32
    %11 = arith.andi %4, %10 : i1
    %12 = arith.extui %11 : i1 to i32
    %c0_i32_4 = arith.constant 0 : i32
    %13 = arith.cmpi ne, %12, %c0_i32_4 : i32
    scf.if %13 {
      %cst = arith.constant 0.000000e+00 : f32
      %37 = vector.broadcast %cst : f32 to vector<128x128xf32>
      %c0 = arith.constant 0 : index
      %c0_14 = arith.constant 0 : index
      %38 = vector.load %arg13[%c0, %c0_14] : memref<128x128xf32, #tpu.memory_space<vmem>>, vector<128x128xf32>
      tpu.vector_store %arg13[%c0, %c0_14], %37 {strides = array<i32>} : memref<128x128xf32, #tpu.memory_space<vmem>>, vector<128x128xf32>,
    } else {
    }
    %c0_i32_5 = arith.constant 0 : i32
    %14 = arith.cmpi eq, %arg2, %c0_i32_5 : i32
    %15 = arith.andi %5, %14 : i1
    %16 = arith.extui %15 : i1 to i32
    %c0_i32_6 = arith.constant 0 : i32
    %17 = arith.cmpi ne, %16, %c0_i32_6 : i32
    scf.if %17 {
      %cst = arith.constant 0.000000e+00 : f32
      %37 = vector.broadcast %cst : f32 to vector<128x128xf32>
      %c0 = arith.constant 0 : index
      %c0_14 = arith.constant 0 : index
      %38 = vector.load %arg10[%c0, %c0_14] : memref<128x128xf32, #tpu.memory_space<vmem>>, vector<128x128xf32>
      tpu.vector_store %arg10[%c0, %c0_14], %37 {strides = array<i32>} : memref<128x128xf32, #tpu.memory_space<vmem>>, vector<128x128xf32>,
    } else {
    }
    %c2_i32 = arith.constant 2 : i32
    %18 = arith.muli %arg1, %c2_i32 : i32
    %19 = arith.addi %18, %arg2 : i32
    %20 = arith.index_cast %19 : i32 to index
    %21 = memref.load %arg4[%20] : memref<4xi32, #tpu.memory_space<smem>>
    %c0_i32_7 = arith.constant 0 : i32
    %22 = arith.cmpi ne, %21, %c0_i32_7 : i32
    %23 = arith.andi %4, %22 : i1
    %24 = arith.extui %23 : i1 to i32
    %c0_i32_8 = arith.constant 0 : i32
    %25 = arith.cmpi ne, %24, %c0_i32_8 : i32
    scf.if %25 {
      %c0 = arith.constant 0 : index
      %c0_14 = arith.constant 0 : index
      %37 = vector.load %arg13[%c0, %c0_14] : memref<128x128xf32, #tpu.memory_space<vmem>>, vector<128x128xf32>
      %c0_15 = arith.constant 0 : index
      %c0_16 = arith.constant 0 : index
      %38 = vector.load %arg5[%c0_15, %c0_16] : memref<128x128xbf16, #tpu.memory_space<vmem>>, vector<128x128xbf16>
      %39 = arith.index_cast %1 : i32 to index
      %c0_17 = arith.constant 0 : index
      %40 = vector.load %arg11[%39, %c0_17] : memref<256x128xbf16, #tpu.memory_space<vmem>>, vector<128x128xbf16>
      %cst = arith.constant dense<0.000000e+00> : vector<128x128xf32>
      %41 = tpu.matmul %38, %40, %cst {dimension_numbers = #tpu.dot_dimension_numbers<[1], [0], [0], [1], [0, 0, 1, 1], [], []>} : vector<128x128xbf16>, vector<128x128xbf16>, vector<128x128xf32> -> vector<128x128xf32>
      %42 = arith.addf %37, %41 : vector<128x128xf32>
      %c0_18 = arith.constant 0 : index
      %c0_19 = arith.constant 0 : index
      %43 = vector.load %arg13[%c0_18, %c0_19] : memref<128x128xf32, #tpu.memory_space<vmem>>, vector<128x128xf32>
      tpu.vector_store %arg13[%c0_18, %c0_19], %42 {strides = array<i32>} : memref<128x128xf32, #tpu.memory_space<vmem>>, vector<128x128xf32>,
    } else {
    }
    %26 = arith.andi %5, %22 : i1
    %27 = arith.extui %26 : i1 to i32
    %c0_i32_9 = arith.constant 0 : i32
    %28 = arith.cmpi ne, %27, %c0_i32_9 : i32
    scf.if %28 {
      %c0 = arith.constant 0 : index
      %c0_14 = arith.constant 0 : index
      %37 = vector.load %arg10[%c0, %c0_14] : memref<128x128xf32, #tpu.memory_space<vmem>>, vector<128x128xf32>
      %c0_15 = arith.constant 0 : index
      %c0_16 = arith.constant 0 : index
      %38 = vector.load %arg5[%c0_15, %c0_16] : memref<128x128xbf16, #tpu.memory_space<vmem>>, vector<128x128xbf16>
      %39 = arith.index_cast %1 : i32 to index
      %c0_17 = arith.constant 0 : index
      %40 = vector.load %arg12[%39, %c0_17] : memref<256x128xbf16, #tpu.memory_space<vmem>>, vector<128x128xbf16>
      %cst = arith.constant dense<0.000000e+00> : vector<128x128xf32>
      %41 = tpu.matmul %38, %40, %cst {dimension_numbers = #tpu.dot_dimension_numbers<[1], [0], [0], [1], [0, 0, 1, 1], [], []>} : vector<128x128xbf16>, vector<128x128xbf16>, vector<128x128xf32> -> vector<128x128xf32>
      %42 = arith.addf %37, %41 : vector<128x128xf32>
      %c0_18 = arith.constant 0 : index
      %c0_19 = arith.constant 0 : index
      %43 = vector.load %arg10[%c0_18, %c0_19] : memref<128x128xf32, #tpu.memory_space<vmem>>, vector<128x128xf32>
      tpu.vector_store %arg10[%c0_18, %c0_19], %42 {strides = array<i32>} : memref<128x128xf32, #tpu.memory_space<vmem>>, vector<128x128xf32>,
    } else {
    }
    %c1_i32_10 = arith.constant 1 : i32
    %29 = arith.cmpi eq, %arg2, %c1_i32_10 : i32
    %30 = arith.andi %4, %29 : i1
    %31 = arith.extui %30 : i1 to i32
    %c0_i32_11 = arith.constant 0 : i32
    %32 = arith.cmpi ne, %31, %c0_i32_11 : i32
    scf.if %32 {
      %c0 = arith.constant 0 : index
      %c0_14 = arith.constant 0 : index
      %37 = vector.load %arg13[%c0, %c0_14] : memref<128x128xf32, #tpu.memory_space<vmem>>, vector<128x128xf32>
      %c0_15 = arith.constant 0 : index
      %c0_16 = arith.constant 0 : index
      %38 = vector.load %arg7[%c0_15, %c0_16] : memref<1x128xf32, #tpu.memory_space<vmem>>, vector<1x128xf32>
      %39 = vector.broadcast %38 : vector<1x128xf32> to vector<128x128xf32>
      %40 = arith.addf %37, %39 : vector<128x128xf32>
      %cst = arith.constant 0.000000e+00 : f32
      %41 = vector.broadcast %cst : f32 to vector<128x128xf32>
      %42 = arith.maximumf %40, %41 : vector<128x128xf32>
      %43 = arith.truncf %42 : vector<128x128xf32> to vector<128x128xbf16>
      %c0_17 = arith.constant 0 : index
      %c0_18 = arith.constant 0 : index
      %44 = vector.load %arg8[%c0_17, %c0_18] : memref<128x128xbf16, #tpu.memory_space<vmem>>, vector<128x128xbf16>
      %cst_19 = arith.constant dense<0.000000e+00> : vector<128x128xf32>
      %45 = tpu.matmul %43, %44, %cst_19 {dimension_numbers = #tpu.dot_dimension_numbers<[1], [0], [0], [1], [0, 0, 1, 1], [], []>} : vector<128x128xbf16>, vector<128x128xbf16>, vector<128x128xf32> -> vector<128x128xf32>
      %46 = arith.truncf %45 : vector<128x128xf32> to vector<128x128xbf16>
      %47 = arith.index_cast %3 : i32 to index
      %c0_20 = arith.constant 0 : index
      %48 = vector.load %arg12[%47, %c0_20] : memref<256x128xbf16, #tpu.memory_space<vmem>>, vector<128x128xbf16>
      tpu.vector_store %arg12[%47, %c0_20], %46 {strides = array<i32>} : memref<256x128xbf16, #tpu.memory_space<vmem>>, vector<128x128xbf16>,
    } else {
    }
    %c1_i32_12 = arith.constant 1 : i32
    %33 = arith.cmpi eq, %arg2, %c1_i32_12 : i32
    %34 = arith.andi %5, %33 : i1
    %35 = arith.extui %34 : i1 to i32
    %c0_i32_13 = arith.constant 0 : i32
    %36 = arith.cmpi ne, %35, %c0_i32_13 : i32
    scf.if %36 {
      %c0 = arith.constant 0 : index
      %c0_14 = arith.constant 0 : index
      %37 = vector.load %arg10[%c0, %c0_14] : memref<128x128xf32, #tpu.memory_space<vmem>>, vector<128x128xf32>
      %c0_15 = arith.constant 0 : index
      %c0_16 = arith.constant 0 : index
      %38 = vector.load %arg9[%c0_15, %c0_16] : memref<1x128xf32, #tpu.memory_space<vmem>>, vector<1x128xf32>
      %39 = vector.broadcast %38 : vector<1x128xf32> to vector<128x128xf32>
      %40 = arith.addf %37, %39 : vector<128x128xf32>
      %c0_17 = arith.constant 0 : index
      %c0_18 = arith.constant 0 : index
      %41 = vector.load %arg10[%c0_17, %c0_18] : memref<128x128xf32, #tpu.memory_space<vmem>>, vector<128x128xf32>
      tpu.vector_store %arg10[%c0_17, %c0_18], %40 {strides = array<i32>} : memref<128x128xf32, #tpu.memory_space<vmem>>, vector<128x128xf32>,
    } else {
    }
    return
  }
  func.func @transform_0(%arg0: i32, %arg1: i32, %arg2: i32, %arg3: memref<4xi32, #tpu.memory_space<smem>>, %arg4: memref<4xi32, #tpu.memory_space<smem>>) -> (i32, i32) {
    %c2_i32 = arith.constant 2 : i32
    %0 = arith.muli %arg1, %c2_i32 : i32
    %1 = arith.addi %0, %arg2 : i32
    %2 = arith.index_cast %1 : i32 to index
    %3 = memref.load %arg3[%2] : memref<4xi32, #tpu.memory_space<smem>>
    %c0_i32 = arith.constant 0 : i32
    return %arg1, %3 : i32, i32
  }
  func.func @transform_1(%arg0: i32, %arg1: i32, %arg2: i32, %arg3: memref<4xi32, #tpu.memory_space<smem>>, %arg4: memref<4xi32, #tpu.memory_space<smem>>) -> (i32, i32) {
    %c0_i32 = arith.constant 0 : i32
    %0 = arith.cmpi eq, %arg0, %c0_i32 : i32
    %1 = arith.extui %0 : i1 to i32
    %2 = arith.muli %arg2, %1 : i32
    %c0_i32_0 = arith.constant 0 : i32
    %3 = arith.cmpi eq, %arg1, %c0_i32_0 : i32
    %4 = arith.extui %3 : i1 to i32
    %5 = arith.muli %2, %4 : i32
    %c0_i32_1 = arith.constant 0 : i32
    %c0_i32_2 = arith.constant 0 : i32
    return %5, %c0_i32_1 : i32, i32
  }
  func.func @transform_2(%arg0: i32, %arg1: i32, %arg2: i32, %arg3: memref<4xi32, #tpu.memory_space<smem>>, %arg4: memref<4xi32, #tpu.memory_space<smem>>) -> (i32, i32) {
    %c0_i32 = arith.constant 0 : i32
    %c0_i32_0 = arith.constant 0 : i32
    %c0_i32_1 = arith.constant 0 : i32
    return %c0_i32, %c0_i32_0 : i32, i32
  }
  func.func @transform_3(%arg0: i32, %arg1: i32, %arg2: i32, %arg3: memref<4xi32, #tpu.memory_space<smem>>, %arg4: memref<4xi32, #tpu.memory_space<smem>>) -> (i32, i32) {
    %c0_i32 = arith.constant 0 : i32
    %c0_i32_0 = arith.constant 0 : i32
    %c0_i32_1 = arith.constant 0 : i32
    return %c0_i32, %c0_i32_0 : i32, i32
  }
  func.func @transform_4(%arg0: i32, %arg1: i32, %arg2: i32, %arg3: memref<4xi32, #tpu.memory_space<smem>>, %arg4: memref<4xi32, #tpu.memory_space<smem>>) -> (i32, i32) {
    %c0_i32 = arith.constant 0 : i32
    %c0_i32_0 = arith.constant 0 : i32
    %c0_i32_1 = arith.constant 0 : i32
    return %c0_i32, %c0_i32_0 : i32, i32
  }
  func.func @transform_5(%arg0: i32, %arg1: i32, %arg2: i32, %arg3: memref<4xi32, #tpu.memory_space<smem>>, %arg4: memref<4xi32, #tpu.memory_space<smem>>) -> (i32, i32) {
    %0 = arith.muli %arg1, %arg0 : i32
    %c0_i32 = arith.constant 0 : i32
    %c0_i32_0 = arith.constant 0 : i32
    return %0, %c0_i32 : i32, i32
  }
}

</mosaic_0001>

<llo_original>
// kernel: tpu_custom_call.1
$region0: #{tpu_custom_call.1}
  #allocation0 [shape = 'u32[]', space=smem, size = 0x4, offset = 0x4, fixed_abs, tag = 'smem constant byte address 0x4 - core index']
  #allocation1 [shape = 'u32[72,128]{1,0:T(1,128)}', space=vmem, size = 0x9000, scoped, tag = 'internal scratch']
  #allocation2 [shape = 'bf16[256,128]{1,0:T(8,128)(2,1)}', space=vmem, size = 0x10000, scoped, tag = 'scratch operand']
  #allocation3 [shape = 'bf16[256,128]{1,0:T(8,128)(2,1)}', space=vmem, size = 0x10000, scoped, tag = 'scratch operand']
  #allocation4 [shape = 'f32[128,128]{1,0:T(8,128)}', space=vmem, size = 0x10000, scoped, tag = 'scratch operand']
  #allocation5 [shape = 's32[1]{0}', space=sflag, size = 0x4, scoped, tag = 'scoped memory for tpu_custom_call.1']
  #allocation6 [shape = 'u8[512]{0}', space=smem, size = 0x200, scoped, tag = 'prefetched SMEM operand 0']
  #allocation7 [shape = 'u8[512]{0}', space=smem, size = 0x200, scoped, tag = 'prefetched SMEM operand 1']
  %s0 = inlined_call_operand.hbm [shape: s32[4], index: 0, kind: input, shape index: {}]
  %s1 = inlined_call_operand.hbm [shape: s32[4], index: 1, kind: input, shape index: {}]
  %s2 = inlined_call_operand.hbm [shape: bf16[256,256], index: 2, kind: input, shape index: {}]
  %s3 = inlined_call_operand.hbm [shape: bf16[256,128], index: 3, kind: input, shape index: {}]
  %s4 = inlined_call_operand.vmem [shape: f32[1,128], index: 4, kind: input, shape index: {}]
  %s5 = inlined_call_operand.hbm [shape: bf16[128,128], index: 5, kind: input, shape index: {}]
  %s6 = inlined_call_operand.vmem [shape: f32[1,128], index: 6, kind: input, shape index: {}]
  %s7 = inlined_call_operand.hbm [shape: f32[256,128], index: 7, kind: output, shape index: {}]
  %s8 = sld [smem:[#allocation0]]
  $region93: #{tpu_custom_call.1} parent=0
    _
  %s10 = ssub.s32 1, %s8
  %s11 = scalar_select 0, %s10, %s8
  %s13 = sshll.u32 %s0, 4
  %s14 = int_to_ptr.hbm [resolvable:$true] %s13
  %16 = dma.hbm_to_smem %s14, 16, [#allocation6], [#allocation5]
  %s18 = sshll.u32 %s1, 4
  %s19 = int_to_ptr.hbm [resolvable:$true] %s18
  %21 = dma.hbm_to_smem %s19, 16, [#allocation7], [#allocation5]
  %23 = dma.done [#allocation5], 32
  %24 = sfence
  $region1: #{tpu_custom_call.1} parent=0
    #allocation8 [shape = 'u8[65536]{0}', space=vmem, size = 0x10000, scoped, tag = 'input window, operand 2']
    #allocation9 [shape = 's32[2]{0}', space=sflag, size = 0x8, scoped, tag = 'scoped memory for tpu_custom_call.1']
    #allocation10 [shape = 's32[2]{0}', space=sflag, size = 0x8, scoped, tag = 'scoped memory for tpu_custom_call.1']
    #allocation11 [shape = 'u8[65536]{0}', space=vmem, size = 0x10000, scoped, tag = 'input window, operand 3']
    #allocation12 [shape = 's32[2]{0}', space=sflag, size = 0x8, scoped, tag = 'scoped memory for tpu_custom_call.1']
    #allocation13 [shape = 'u8[32768]{0}', space=vmem, size = 0x8000, scoped, tag = 'input window, operand 5, single buffered']
    #allocation14 [shape = 'u8[131072]{0}', space=vmem, size = 0x20000, scoped, tag = 'output window, operand 0']
    %25 = vsyncpa [#allocation9], 0
    %s26 = scalar_lea.sflag [#allocation9], 1
    %27 = vsyncpa %s26, 0
    %28 = vsyncpa [#allocation12], 0
    %s29 = scalar_lea.sflag [#allocation12], 1
    %30 = vsyncpa %s29, 0
    %31 = vsyncpa [#allocation10], 0
    %s32 = scalar_lea.sflag [#allocation10], 1
    %33 = vsyncpa %s32, 0
    loop: start=0, step=1, limit=10
    $region2: #{tpu_custom_call.1} parent=1 // loop_pre_header
      _
    $region3: #{tpu_custom_call.1} parent=1 // loop_header
      %s35 = sphi 0, %s39
      %p36 = scmp.ge.s32.totalorder %s35, 10
      %s42 = sphi 0, %s61
      %s43 = sphi 0, %s57
      %s44 = sphi 0, %s53
      %s45 = sphi 0, %s42
      %s46 = sphi 0, %s43
      %s47 = sphi 0, %s44
      %s48 = sphi 0, %s45
      %s49 = sphi 0, %s46
      %s50 = sphi 0, %s47
      %s72 = sphi 0, %s74
      %s75 = sphi 0, %s72
      %s76 = sphi 0, %s75
      %s92 = sphi 0, %s76
      %s110 = sphi 0, %s112
      %s113 = sphi 0, %s110
      %s114 = sphi 0, %s113
      %s130 = sphi 0, %s114
      %s134 = sphi 0, %s134
      %s136 = sphi 0, %s134
      %s137 = sphi 0, %s136
      %s151 = sphi 0, %s137
      %s155 = sphi 0, %s155
      %s157 = sphi 0, %s155
      %s158 = sphi 0, %s157
      %s172 = sphi 0, %s158
      %s176 = sphi 0, %s176
      %s178 = sphi 0, %s176
      %s179 = sphi 0, %s178
      %s193 = sphi 0, %s179
      %s201 = sphi 0, %s203
      %s204 = sphi 0, %s201
      %s205 = sphi 0, %s204
      %s221 = sphi 0, %s205
    $region4: #{tpu_custom_call.1} parent=1 // loop_header_branch
      %38 = sbr.rel (%p36) target = $region8
    $region5: #{tpu_custom_call.1} parent=1 // loop_body
      %s40 = ssub.s32 %s35, 1
      %s41 = ssub.s32 %s35, 2
      %s51 = sadd.s32 1, %s44
      %p52 = scmp.ge.s32.totalorder %s51, 2
      %s53 = scalar_select %p52, 0, %s51
      %s54 = sadd.s32 1, %s43
      %s55 = scalar_select %p52, %s54, %s43
      %p56 = scmp.ge.s32.totalorder %s55, 2
      %s57 = scalar_select %p56, 0, %s55
      %s58 = sadd.s32 1, %s42
      %s59 = scalar_select %p56, %s58, %s42
      %p60 = scmp.ge.s32.totalorder %s59, 2
      %s61 = scalar_select %p60, 0, %s59
      %s62 = smul.u32 %s43, 2
      %s63 = sadd.s32 %s62, %s44
      %s64 = sld [smem:[#allocation6 + %s63]]
      %s65 = smul.u32 %s57, 2
      %s66 = sadd.s32 %s65, %s53
      %s67 = sld [smem:[#allocation6 + %s66]]
      %s68 = ssub.s32 %s43, %s57
      %s69 = ssub.s32 %s64, %s67
      %s70 = sor.u32 %s68, %s69
      %p71 = scmp.eq.s32.totalorder %s70, 0
      %s73 = sadd.s32 %s72, 1
      %s74 = scalar_select %p71, %s72, %s73
      %p77 = pneg %p71
      %p78 = scmp.eq.s32.totalorder %s35, 7
      %p79 = por %p77, %p78
      %p80 = scmp.ne.s32.totalorder %s72, %s75
      %p81 = scmp.eq.s32.totalorder %s35, 0
      %p82 = por %p80, %p81
      %p83 = scmp.ne.s32.totalorder %s72, %s75
      %p84 = scmp.eq.s32.totalorder %s40, 7
      %p85 = por %p83, %p84
      %p86 = scmp.ne.s32.totalorder %s75, %s76
      %p87 = scmp.eq.s32.totalorder %s40, 0
      %p88 = por %p86, %p87
      %p89 = scmp.ne.s32.totalorder %s75, %s76
      %p90 = scmp.eq.s32.totalorder %s41, 7
      %p91 = por %p89, %p90
      %p93 = scmp.ne.s32.totalorder %s76, %s92
      %p94 = scmp.eq.s32.totalorder %s41, 0
      %p95 = por %p93, %p94
      %p96 = scmp.eq.s32.totalorder %s42, 0
      %s97 = scalar_select %p96, 1, 0
      %s98 = smul.u32 %s44, %s97
      %p99 = scmp.eq.s32.totalorder %s43, 0
      %s100 = scalar_select %p99, 1, 0
      %s101 = smul.u32 %s98, %s100
      %p102 = scmp.eq.s32.totalorder %s61, 0
      %s103 = scalar_select %p102, 1, 0
      %s104 = smul.u32 %s53, %s103
      %p105 = scmp.eq.s32.totalorder %s57, 0
      %s106 = scalar_select %p105, 1, 0
      %s107 = smul.u32 %s104, %s106
      %s108 = ssub.s32 %s101, %s107
      %p109 = scmp.eq.s32.totalorder %s108, 0
      %s111 = sadd.s32 %s110, 1
      %s112 = scalar_select %p109, %s110, %s111
      %p115 = pneg %p109
      %p116 = scmp.eq.s32.totalorder %s35, 7
      %p117 = por %p115, %p116
      %p118 = scmp.ne.s32.totalorder %s110, %s113
      %p119 = scmp.eq.s32.totalorder %s35, 0
      %p120 = por %p118, %p119
      %p121 = scmp.ne.s32.totalorder %s110, %s113
      %p122 = scmp.eq.s32.totalorder %s40, 7
      %p123 = por %p121, %p122
      %p124 = scmp.ne.s32.totalorder %s113, %s114
      %p125 = scmp.eq.s32.totalorder %s40, 0
      %p126 = por %p124, %p125
      %p127 = scmp.ne.s32.totalorder %s113, %s114
      %p128 = scmp.eq.s32.totalorder %s41, 7
      %p129 = por %p127, %p128
      %p131 = scmp.ne.s32.totalorder %s114, %s130
      %p132 = scmp.eq.s32.totalorder %s41, 0
      %p133 = por %p131, %p132
      %s135 = sadd.s32 %s134, 1
      %p138 = scmp.eq.s32.totalorder %s35, 7
      %p139 = scmp.ne.s32.totalorder %s134, %s136
      %p140 = scmp.eq.s32.totalorder %s35, 0
      %p141 = por %p139, %p140
      %p142 = scmp.ne.s32.totalorder %s134, %s136
      %p143 = scmp.eq.s32.totalorder %s40, 7
      %p144 = por %p142, %p143
      %p145 = scmp.ne.s32.totalorder %s136, %s137
      %p146 = scmp.eq.s32.totalorder %s40, 0
      %p147 = por %p145, %p146
      %p148 = scmp.ne.s32.totalorder %s136, %s137
      %p149 = scmp.eq.s32.totalorder %s41, 7
      %p150 = por %p148, %p149
      %p152 = scmp.ne.s32.totalorder %s137, %s151
      %p153 = scmp.eq.s32.totalorder %s41, 0
      %p154 = por %p152, %p153
      %s156 = sadd.s32 %s155, 1
      %p159 = scmp.eq.s32.totalorder %s35, 7
      %p160 = scmp.ne.s32.totalorder %s155, %s157
      %p161 = scmp.eq.s32.totalorder %s35, 0
      %p162 = por %p160, %p161
      %p163 = scmp.ne.s32.totalorder %s155, %s157
      %p164 = scmp.eq.s32.totalorder %s40, 7
      %p165 = por %p163, %p164
      %p166 = scmp.ne.s32.totalorder %s157, %s158
      %p167 = scmp.eq.s32.totalorder %s40, 0
      %p168 = por %p166, %p167
      %p169 = scmp.ne.s32.totalorder %s157, %s158
      %p170 = scmp.eq.s32.totalorder %s41, 7
      %p171 = por %p169, %p170
      %p173 = scmp.ne.s32.totalorder %s158, %s172
      %p174 = scmp.eq.s32.totalorder %s41, 0
      %p175 = por %p173, %p174
      %s177 = sadd.s32 %s176, 1
      %p180 = scmp.eq.s32.totalorder %s35, 7
      %p181 = scmp.ne.s32.totalorder %s176, %s178
      %p182 = scmp.eq.s32.totalorder %s35, 0
      %p183 = por %p181, %p182
      %p184 = scmp.ne.s32.totalorder %s176, %s178
      %p185 = scmp.eq.s32.totalorder %s40, 7
      %p186 = por %p184, %p185
      %p187 = scmp.ne.s32.totalorder %s178, %s179
      %p188 = scmp.eq.s32.totalorder %s40, 0
      %p189 = por %p187, %p188
      %p190 = scmp.ne.s32.totalorder %s178, %s179
      %p191 = scmp.eq.s32.totalorder %s41, 7
      %p192 = por %p190, %p191
      %p194 = scmp.ne.s32.totalorder %s179, %s193
      %p195 = scmp.eq.s32.totalorder %s41, 0
      %p196 = por %p194, %p195
      %s197 = smul.u32 %s43, %s42
      %s198 = smul.u32 %s57, %s61
      %s199 = ssub.s32 %s197, %s198
      %p200 = scmp.eq.s32.totalorder %s199, 0
      %s202 = sadd.s32 %s201, 1
      %s203 = scalar_select %p200, %s201, %s202
      %p206 = pneg %p200
      %p207 = scmp.eq.s32.totalorder %s35, 7
      %p208 = por %p206, %p207
      %p209 = scmp.ne.s32.totalorder %s201, %s204
      %p210 = scmp.eq.s32.totalorder %s35, 0
      %p211 = por %p209, %p210
      %p212 = scmp.ne.s32.totalorder %s201, %s204
      %p213 = scmp.eq.s32.totalorder %s40, 7
      %p214 = por %p212, %p213
      %p215 = scmp.ne.s32.totalorder %s204, %s205
      %p216 = scmp.eq.s32.totalorder %s40, 0
      %p217 = por %p215, %p216
      %p218 = scmp.ne.s32.totalorder %s204, %s205
      %p219 = scmp.eq.s32.totalorder %s41, 7
      %p220 = por %p218, %p219
      %p222 = scmp.ne.s32.totalorder %s205, %s221
      %p223 = scmp.eq.s32.totalorder %s41, 0
      %p224 = por %p222, %p223
      %p225 = scmp.le.s32.totalorder 1, %s35
      %p226 = scmp.lt.s32.totalorder %s35, 9
      %p227 = pnand %p225, %p226
      %p228 = pneg %p227
      // Predicated region
      $region9: #{tpu_custom_call.1} parent=5 // pred_check
        _
      $region10: #{tpu_custom_call.1} parent=5 // pred_check_branch
        %230 = sbr.rel (%p227) target = $region12
      $region11: #{tpu_custom_call.1} parent=5 // pred_region
        %s231 = ssub.s32 %s35, 1
        // Predicated region
        $region13: #{tpu_custom_call.1} parent=11 // pred_check
          %p232 = pneg %p147
        $region14: #{tpu_custom_call.1} parent=11 // pred_check_branch
          %234 = sbr.rel (%p232) target = $region16
        $region15: #{tpu_custom_call.1} parent=11 // pred_region
          _
        $region16: #{tpu_custom_call.1} parent=11 // pred_fallthru
          _
        // Predicated region
        $region17: #{tpu_custom_call.1} parent=11 // pred_check
          %p235 = pneg %p168
        $region18: #{tpu_custom_call.1} parent=11 // pred_check_branch
          %237 = sbr.rel (%p235) target = $region20
        $region19: #{tpu_custom_call.1} parent=11 // pred_region
          %239 = vsyncadd [#allocation12], 0
          %s240 = sshll.u32 %s5, 4
          %s241 = int_to_ptr.hbm [resolvable:$true] %s240
          %s242 = sshll.u32 [#allocation13], 4
          %s243 = int_to_ptr.vmem [resolvable:$true] %s242
          %248 = dma.hbm_to_vmem [thread:$0]  %s241, 1024, %s243, [#allocation12], 64, 64, 4
        $region20: #{tpu_custom_call.1} parent=11 // pred_fallthru
          _
        // Predicated region
        $region21: #{tpu_custom_call.1} parent=11 // pred_check
          %p249 = pneg %p189
        $region22: #{tpu_custom_call.1} parent=11 // pred_check_branch
          %251 = sbr.rel (%p249) target = $region24
        $region23: #{tpu_custom_call.1} parent=11 // pred_region
          _
        $region24: #{tpu_custom_call.1} parent=11 // pred_fallthru
          _
      $region12: #{tpu_custom_call.1} parent=5 // pred_fallthru
        _
      %p252 = scmp.lt.s32.totalorder %s35, 8
      // Predicated region
      $region25: #{tpu_custom_call.1} parent=5 // pred_check
        %p253 = pneg %p252
      $region26: #{tpu_custom_call.1} parent=5 // pred_check_branch
        %255 = sbr.rel (%p253) target = $region28
      $region27: #{tpu_custom_call.1} parent=5 // pred_region
        // Predicated region
        $region29: #{tpu_custom_call.1} parent=27 // pred_check
          %p256 = pneg %p82
        $region30: #{tpu_custom_call.1} parent=27 // pred_check_branch
          %258 = sbr.rel (%p256) target = $region32
        $region31: #{tpu_custom_call.1} parent=27 // pred_region
          %s259 = sand.u32 %s72, 1
          %s260 = scalar_lea.sflag [#allocation9], %s259
          %s261 = sand.u32 %s72, 1
          %s262 = smul.addr %s261, 64
          %s263 = scalar_lea.vmem [#allocation8], %s262
          %s264 = smul.u32 %s43, 2
          %s265 = sadd.s32 %s264, %s44
          %s266 = sld [smem:[#allocation6 + %s265]]
          %s267 = smul.u32 16, %s43
          %269 = vsyncadd %s260, 0
          %s270 = smul.addr %s267, 2
          %s271 = sadd.s32 %s266, %s270
          %s272 = smul.addr %s271, 4
          %s273 = scalar_lea.hbm %s2, %s272
          %s274 = sshll.u32 %s273, 4
          %s275 = int_to_ptr.hbm [resolvable:$true] %s274
          %s276 = sshll.u32 %s263, 4
          %s277 = int_to_ptr.vmem [resolvable:$true] %s276
          %282 = dma.hbm_to_vmem [thread:$0]  %s275, 1024, %s277, %s260, 128, 64, 4
        $region32: #{tpu_custom_call.1} parent=27 // pred_fallthru
          _
        // Predicated region
        $region33: #{tpu_custom_call.1} parent=27 // pred_check
          %p283 = pneg %p120
        $region34: #{tpu_custom_call.1} parent=27 // pred_check_branch
          %285 = sbr.rel (%p283) target = $region36
        $region35: #{tpu_custom_call.1} parent=27 // pred_region
          %s286 = sand.u32 %s35, 1
          %s287 = scalar_lea.sflag [#allocation12], %s286
          %s288 = sand.u32 %s110, 1
          %s289 = smul.addr %s288, 64
          %s290 = scalar_lea.vmem [#allocation11], %s289
          %p291 = scmp.eq.s32.totalorder %s42, 0
          %s292 = scalar_select %p291, 1, 0
          %s293 = smul.u32 %s44, %s292
          %p294 = scmp.eq.s32.totalorder %s43, 0
          %s295 = scalar_select %p294, 1, 0
          %s296 = smul.u32 %s293, %s295
          %s297 = smul.u32 16, %s296
          %299 = vsyncadd %s287, 0
          %s300 = smul.addr %s297, 4
          %s301 = scalar_lea.hbm %s3, %s300
          %s302 = sshll.u32 %s301, 4
          %s303 = int_to_ptr.hbm [resolvable:$true] %s302
          %s304 = sshll.u32 %s290, 4
          %s305 = int_to_ptr.vmem [resolvable:$true] %s304
          %310 = dma.hbm_to_vmem [thread:$0]  %s303, 1024, %s305, %s287, 64, 64, 4
        $region36: #{tpu_custom_call.1} parent=27 // pred_fallthru
          _
      $region28: #{tpu_custom_call.1} parent=5 // pred_fallthru
        _
      %p311 = scmp.le.s32.totalorder 1, %s35
      %p312 = scmp.lt.s32.totalorder %s35, 9
      %p313 = pnand %p311, %p312
      %p314 = pneg %p313
      // Predicated region
      $region37: #{tpu_custom_call.1} parent=5 // pred_check
        _
      $region38: #{tpu_custom_call.1} parent=5 // pred_check_branch
        %316 = sbr.rel (%p313) target = $region40
      $region39: #{tpu_custom_call.1} parent=5 // pred_region
        %s317 = ssub.s32 %s35, 1
        %s318 = sand.u32 %s75, 1
        %s319 = scalar_lea.sflag [#allocation9], %s318
        %s320 = sand.u32 %s75, 1
        %s321 = smul.addr %s320, 64
        %s322 = scalar_lea.vmem [#allocation8], %s321
        // Predicated region
        $region41: #{tpu_custom_call.1} parent=39 // pred_check
          %p323 = pneg %p88
        $region42: #{tpu_custom_call.1} parent=39 // pred_check_branch
          %325 = sbr.rel (%p323) target = $region44
        $region43: #{tpu_custom_call.1} parent=39 // pred_region
          %327 = dma.done %s319, 1024
        $region44: #{tpu_custom_call.1} parent=39 // pred_fallthru
          _
        %s328 = sand.u32 %s40, 1
        %s329 = scalar_lea.sflag [#allocation12], %s328
        %s330 = sand.u32 %s113, 1
        %s331 = smul.addr %s330, 64
        %s332 = scalar_lea.vmem [#allocation11], %s331
        // Predicated region
        $region45: #{tpu_custom_call.1} parent=39 // pred_check
          %p333 = pneg %p126
        $region46: #{tpu_custom_call.1} parent=39 // pred_check_branch
          %335 = sbr.rel (%p333) target = $region48
        $region47: #{tpu_custom_call.1} parent=39 // pred_region
          %337 = dma.done %s329, 1024
        $region48: #{tpu_custom_call.1} parent=39 // pred_fallthru
          _
        // Predicated region
        $region49: #{tpu_custom_call.1} parent=39 // pred_check
          %p338 = pneg %p168
        $region50: #{tpu_custom_call.1} parent=39 // pred_check_branch
          %340 = sbr.rel (%p338) target = $region52
        $region51: #{tpu_custom_call.1} parent=39 // pred_region
          %342 = dma.done [#allocation12], 1024
        $region52: #{tpu_custom_call.1} parent=39 // pred_fallthru
          _
        %s343 = sand.u32 %s75, 1
        %s344 = scalar_lea.sflag [#allocation9], %s343
        %s345 = sand.u32 %s75, 1
        %s346 = smul.addr %s345, 64
        %s347 = scalar_lea.vmem [#allocation8], %s346
        %p348 = pneg %p88
        %p349 = pneg %p85
        %s350 = sand.u32 %s40, 1
        %s351 = scalar_lea.sflag [#allocation12], %s350
        %s352 = sand.u32 %s113, 1
        %s353 = smul.addr %s352, 64
        %s354 = scalar_lea.vmem [#allocation11], %s353
        %p355 = pneg %p126
        %p356 = pneg %p123
        %p357 = pneg %p147
        %p358 = pneg %p144
        %p359 = pneg %p168
        %p360 = pneg %p165
        %p361 = pneg %p189
        %p362 = pneg %p186
        %p363 = pneg %p217
        %p364 = pneg %p214
        %s365 = sand.u32 %s204, 1
        %s366 = scalar_lea.sflag [#allocation10], %s365
        %s367 = sand.u32 %s204, 1
        %s368 = smul.addr %s367, 128
        %s369 = scalar_lea.vmem [#allocation14], %s368
        %s370 = smul.u32 %s46, 2
        %s371 = sadd.s32 %s370, %s47
        %s372 = sld [smem:[#allocation6 + %s371]]
        %s373 = smul.u32 16, %s46
        %p374 = scmp.eq.s32.totalorder %s45, 0
        %s375 = scalar_select %p374, 1, 0
        %s376 = smul.u32 %s47, %s375
        %p377 = scmp.eq.s32.totalorder %s46, 0
        %s378 = scalar_select %p377, 1, 0
        %s379 = smul.u32 %s376, %s378
        %s380 = smul.u32 16, %s379
        %s381 = smul.u32 %s46, %s45
        %s382 = smul.u32 16, %s381
        %s383 = smul.u32 %s47, 128
        %s384 = smul.u32 %s46, 128
        %p385 = scmp.eq.s32.totalorder %s45, 0
        %p386 = scmp.eq.s32.totalorder %s45, 1
        %p387 = scmp.eq.s32.totalorder %s46, 0
        %p388 = pnand %p385, %p387
        %p389 = pneg %p388
        // Predicated region
        $region53: #{tpu_custom_call.1} parent=39 // pred_check
          _
        $region54: #{tpu_custom_call.1} parent=39 // pred_check_branch
          %391 = sbr.rel (%p388) target = $region56
        $region55: #{tpu_custom_call.1} parent=39 // pred_region
          %v392 = vld [vmem:[%s332] sm:$0xf]
          %v393 = vld [vmem:[%s332 + $0x4] sm:$0xf]
          %v394 = vld [vmem:[%s332 + $0x8] sm:$0xf]
          %v395 = vld [vmem:[%s332 + $0xc] sm:$0xf]
          %v396 = vld [vmem:[%s332 + $0x10] sm:$0xf]
          %v397 = vld [vmem:[%s332 + $0x14] sm:$0xf]
          %v398 = vld [vmem:[%s332 + $0x18] sm:$0xf]
          %v399 = vld [vmem:[%s332 + $0x1c] sm:$0xf]
          %v400 = vld [vmem:[%s332 + $0x20] sm:$0xf]
          %v401 = vld [vmem:[%s332 + $0x24] sm:$0xf]
          %v402 = vld [vmem:[%s332 + $0x28] sm:$0xf]
          %v403 = vld [vmem:[%s332 + $0x2c] sm:$0xf]
          %v404 = vld [vmem:[%s332 + $0x30] sm:$0xf]
          %v405 = vld [vmem:[%s332 + $0x34] sm:$0xf]
          %v406 = vld [vmem:[%s332 + $0x38] sm:$0xf]
          %v407 = vld [vmem:[%s332 + $0x3c] sm:$0xf]
          %s408 = sshra.s32 %s383, 3
          %s409 = sand.u32 %s383, 7
          %s410 = smul.addr %s408, 4
          %s411 = scalar_lea.vmem [#allocation2], %s410
          %412 = vst [vmem:[%s411] sm:$0xf] %v392
          %413 = vst [vmem:[%s411 + $0x4] sm:$0xf] %v393
          %414 = vst [vmem:[%s411 + $0x8] sm:$0xf] %v394
          %415 = vst [vmem:[%s411 + $0xc] sm:$0xf] %v395
          %416 = vst [vmem:[%s411 + $0x10] sm:$0xf] %v396
          %417 = vst [vmem:[%s411 + $0x14] sm:$0xf] %v397
          %418 = vst [vmem:[%s411 + $0x18] sm:$0xf] %v398
          %419 = vst [vmem:[%s411 + $0x1c] sm:$0xf] %v399
          %420 = vst [vmem:[%s411 + $0x20] sm:$0xf] %v400
          %421 = vst [vmem:[%s411 + $0x24] sm:$0xf] %v401
          %422 = vst [vmem:[%s411 + $0x28] sm:$0xf] %v402
          %423 = vst [vmem:[%s411 + $0x2c] sm:$0xf] %v403
          %424 = vst [vmem:[%s411 + $0x30] sm:$0xf] %v404
          %425 = vst [vmem:[%s411 + $0x34] sm:$0xf] %v405
          %426 = vst [vmem:[%s411 + $0x38] sm:$0xf] %v406
          %427 = vst [vmem:[%s411 + $0x3c] sm:$0xf] %v407
        $region56: #{tpu_custom_call.1} parent=39 // pred_fallthru
          _
        %p428 = scmp.eq.s32.totalorder %s47, 0
        %p429 = pnand %p385, %p428
        %p430 = pneg %p429
        // Predicated region
        $region57: #{tpu_custom_call.1} parent=39 // pred_check
          _
        $region58: #{tpu_custom_call.1} parent=39 // pred_check_branch
          %432 = sbr.rel (%p429) target = $region60
        $region59: #{tpu_custom_call.1} parent=39 // pred_region
          %433 = vst [vmem:[#allocation4] sm:$0xff] 0.0
          %434 = vst [vmem:[#allocation4 + $0x8] sm:$0xff] 0.0
          %435 = vst [vmem:[#allocation4 + $0x10] sm:$0xff] 0.0
          %436 = vst [vmem:[#allocation4 + $0x18] sm:$0xff] 0.0
          %437 = vst [vmem:[#allocation4 + $0x20] sm:$0xff] 0.0
          %438 = vst [vmem:[#allocation4 + $0x28] sm:$0xff] 0.0
          %439 = vst [vmem:[#allocation4 + $0x30] sm:$0xff] 0.0
          %440 = vst [vmem:[#allocation4 + $0x38] sm:$0xff] 0.0
          %441 = vst [vmem:[#allocation4 + $0x40] sm:$0xff] 0.0
          %442 = vst [vmem:[#allocation4 + $0x48] sm:$0xff] 0.0
          %443 = vst [vmem:[#allocation4 + $0x50] sm:$0xff] 0.0
          %444 = vst [vmem:[#allocation4 + $0x58] sm:$0xff] 0.0
          %445 = vst [vmem:[#allocation4 + $0x60] sm:$0xff] 0.0
          %446 = vst [vmem:[#allocation4 + $0x68] sm:$0xff] 0.0
          %447 = vst [vmem:[#allocation4 + $0x70] sm:$0xff] 0.0
          %448 = vst [vmem:[#allocation4 + $0x78] sm:$0xff] 0.0
        $region60: #{tpu_custom_call.1} parent=39 // pred_fallthru
          _
        %p449 = pnand %p386, %p428
        %p450 = pneg %p449
        // Predicated region
        $region61: #{tpu_custom_call.1} parent=39 // pred_check
          _
        $region62: #{tpu_custom_call.1} parent=39 // pred_check_branch
          %452 = sbr.rel (%p449) target = $region64
        $region63: #{tpu_custom_call.1} parent=39 // pred_region
          %453 = vst [vmem:[%s369] sm:$0xff] 0.0
          %454 = vst [vmem:[%s369 + $0x8] sm:$0xff] 0.0
          %455 = vst [vmem:[%s369 + $0x10] sm:$0xff] 0.0
          %456 = vst [vmem:[%s369 + $0x18] sm:$0xff] 0.0
          %457 = vst [vmem:[%s369 + $0x20] sm:$0xff] 0.0
          %458 = vst [vmem:[%s369 + $0x28] sm:$0xff] 0.0
          %459 = vst [vmem:[%s369 + $0x30] sm:$0xff] 0.0
          %460 = vst [vmem:[%s369 + $0x38] sm:$0xff] 0.0
          %461 = vst [vmem:[%s369 + $0x40] sm:$0xff] 0.0
          %462 = vst [vmem:[%s369 + $0x48] sm:$0xff] 0.0
          %463 = vst [vmem:[%s369 + $0x50] sm:$0xff] 0.0
          %464 = vst [vmem:[%s369 + $0x58] sm:$0xff] 0.0
          %465 = vst [vmem:[%s369 + $0x60] sm:$0xff] 0.0
          %466 = vst [vmem:[%s369 + $0x68] sm:$0xff] 0.0
          %467 = vst [vmem:[%s369 + $0x70] sm:$0xff] 0.0
          %468 = vst [vmem:[%s369 + $0x78] sm:$0xff] 0.0
        $region64: #{tpu_custom_call.1} parent=39 // pred_fallthru
          _
        %s469 = smul.u32 %s46, 2
        %s470 = sadd.s32 %s469, %s47
        %s471 = sld [smem:[#allocation7 + %s470]]
        %p472 = scmp.ne.s32.totalorder %s471, 0
        %p473 = pnand %p385, %p472
        %p474 = pneg %p473
        // Predicated region
        $region65: #{tpu_custom_call.1} parent=39 // pred_check
          _
        $region66: #{tpu_custom_call.1} parent=39 // pred_check_branch
          %476 = sbr.rel (%p473) target = $region68
        $region67: #{tpu_custom_call.1} parent=39 // pred_region
          %v477 = vld [vmem:[#allocation4] sm:$0xff]
          %v478 = vld [vmem:[#allocation4 + $0x8] sm:$0xff]
          %v479 = vld [vmem:[#allocation4 + $0x10] sm:$0xff]
          %v480 = vld [vmem:[#allocation4 + $0x18] sm:$0xff]
          %v481 = vld [vmem:[#allocation4 + $0x20] sm:$0xff]
          %v482 = vld [vmem:[#allocation4 + $0x28] sm:$0xff]
          %v483 = vld [vmem:[#allocation4 + $0x30] sm:$0xff]
          %v484 = vld [vmem:[#allocation4 + $0x38] sm:$0xff]
          %v485 = vld [vmem:[#allocation4 + $0x40] sm:$0xff]
          %v486 = vld [vmem:[#allocation4 + $0x48] sm:$0xff]
          %v487 = vld [vmem:[#allocation4 + $0x50] sm:$0xff]
          %v488 = vld [vmem:[#allocation4 + $0x58] sm:$0xff]
          %v489 = vld [vmem:[#allocation4 + $0x60] sm:$0xff]
          %v490 = vld [vmem:[#allocation4 + $0x68] sm:$0xff]
          %v491 = vld [vmem:[#allocation4 + $0x70] sm:$0xff]
          %v492 = vld [vmem:[#allocation4 + $0x78] sm:$0xff]
          %v493 = vld [vmem:[%s322] sm:$0xf]
          %v494 = vld [vmem:[%s322 + $0x4] sm:$0xf]
          %v495 = vld [vmem:[%s322 + $0x8] sm:$0xf]
          %v496 = vld [vmem:[%s322 + $0xc] sm:$0xf]
          %v497 = vld [vmem:[%s322 + $0x10] sm:$0xf]
          %v498 = vld [vmem:[%s322 + $0x14] sm:$0xf]
          %v499 = vld [vmem:[%s322 + $0x18] sm:$0xf]
          %v500 = vld [vmem:[%s322 + $0x1c] sm:$0xf]
          %v501 = vld [vmem:[%s322 + $0x20] sm:$0xf]
          %v502 = vld [vmem:[%s322 + $0x24] sm:$0xf]
          %v503 = vld [vmem:[%s322 + $0x28] sm:$0xf]
          %v504 = vld [vmem:[%s322 + $0x2c] sm:$0xf]
          %v505 = vld [vmem:[%s322 + $0x30] sm:$0xf]
          %v506 = vld [vmem:[%s322 + $0x34] sm:$0xf]
          %v507 = vld [vmem:[%s322 + $0x38] sm:$0xf]
          %v508 = vld [vmem:[%s322 + $0x3c] sm:$0xf]
          %s509 = sshra.s32 %s383, 3
          %s510 = sand.u32 %s383, 7
          %s511 = smul.addr %s509, 4
          %s512 = scalar_lea.vmem [#allocation2], %s511
          %v513 = vld [vmem:[%s512] sm:$0xf]
          %v514 = vld [vmem:[%s512 + $0x4] sm:$0xf]
          %v515 = vld [vmem:[%s512 + $0x8] sm:$0xf]
          %v516 = vld [vmem:[%s512 + $0xc] sm:$0xf]
          %v517 = vld [vmem:[%s512 + $0x10] sm:$0xf]
          %v518 = vld [vmem:[%s512 + $0x14] sm:$0xf]
          %v519 = vld [vmem:[%s512 + $0x18] sm:$0xf]
          %v520 = vld [vmem:[%s512 + $0x1c] sm:$0xf]
          %v521 = vld [vmem:[%s512 + $0x20] sm:$0xf]
          %v522 = vld [vmem:[%s512 + $0x24] sm:$0xf]
          %v523 = vld [vmem:[%s512 + $0x28] sm:$0xf]
          %v524 = vld [vmem:[%s512 + $0x2c] sm:$0xf]
          %v525 = vld [vmem:[%s512 + $0x30] sm:$0xf]
          %v526 = vld [vmem:[%s512 + $0x34] sm:$0xf]
          %v527 = vld [vmem:[%s512 + $0x38] sm:$0xf]
          %v528 = vld [vmem:[%s512 + $0x3c] sm:$0xf]
          %v545 = vunpack.c.l.b16 %v493
          %v546 = vunpack.c.l.b16 %v494
          %v547 = vunpack.c.l.b16 %v495
          %v548 = vunpack.c.l.b16 %v496
          %v549 = vunpack.c.l.b16 %v497
          %v550 = vunpack.c.l.b16 %v498
          %v551 = vunpack.c.l.b16 %v499
          %v552 = vunpack.c.l.b16 %v500
          %v553 = vunpack.c.l.b16 %v501
          %v554 = vunpack.c.l.b16 %v502
          %v555 = vunpack.c.l.b16 %v503
          %v556 = vunpack.c.l.b16 %v504
          %v557 = vunpack.c.l.b16 %v505
          %v558 = vunpack.c.l.b16 %v506
          %v559 = vunpack.c.l.b16 %v507
          %v560 = vunpack.c.l.b16 %v508
          %v561 = vpack.c.b16 %v546, %v545
          %v562 = vpack.c.b16 %v548, %v547
          %v563 = vpack.c.b16 %v550, %v549
          %v564 = vpack.c.b16 %v552, %v551
          %v565 = vpack.c.b16 %v554, %v553
          %v566 = vpack.c.b16 %v556, %v555
          %v567 = vpack.c.b16 %v558, %v557
          %v568 = vpack.c.b16 %v560, %v559
          %v593 = vunpack.c.l.b16 %v513
          %v594 = vunpack.c.l.b16 %v514
          %v595 = vunpack.c.l.b16 %v515
          %v596 = vunpack.c.l.b16 %v516
          %v597 = vunpack.c.l.b16 %v517
          %v598 = vunpack.c.l.b16 %v518
          %v599 = vunpack.c.l.b16 %v519
          %v600 = vunpack.c.l.b16 %v520
          %v601 = vunpack.c.l.b16 %v521
          %v602 = vunpack.c.l.b16 %v522
          %v603 = vunpack.c.l.b16 %v523
          %v604 = vunpack.c.l.b16 %v524
          %v605 = vunpack.c.l.b16 %v525
          %v606 = vunpack.c.l.b16 %v526
          %v607 = vunpack.c.l.b16 %v527
          %v608 = vunpack.c.l.b16 %v528
          %v609 = vpack.c.b16 %v594, %v593
          %v610 = vpack.c.b16 %v596, %v595
          %v611 = vpack.c.b16 %v598, %v597
          %v612 = vpack.c.b16 %v600, %v599
          %v613 = vpack.c.b16 %v602, %v601
          %v614 = vpack.c.b16 %v604, %v603
          %v615 = vpack.c.b16 %v606, %v605
          %v616 = vpack.c.b16 %v608, %v607
          %625 = vmatpush.bf16.msra.mxu0 %v616
          %626 = vmatpush.bf16.msra.mxu0 %v615
          %627 = vmatpush.bf16.msra.mxu0 %v614
          %628 = vmatpush.bf16.msra.mxu0 %v613
          %629 = vmatpush.bf16.msra.mxu0 %v612
          %630 = vmatpush.bf16.msra.mxu0 %v611
          %631 = vmatpush.bf16.msra.mxu0 %v610
          %632 = vmatpush.bf16.msra.mxu0 %v609
          %633 = vmatmul.bf16.gmra.mxu0 %v561
          %v634 = vpop.f32.mrf.mxu0
          %v635 = vadd.f32 0.0, %v634
          %v636 = vpop.f32.mrf.mxu0
          %v637 = vadd.f32 0.0, %v636
          %638 = vmatmul.bf16.gmra.mxu0 %v562
          %v639 = vpop.f32.mrf.mxu0
          %v640 = vadd.f32 0.0, %v639
          %v641 = vpop.f32.mrf.mxu0
          %v642 = vadd.f32 0.0, %v641
          %643 = vmatmul.bf16.gmra.mxu0 %v563
          %v644 = vpop.f32.mrf.mxu0
          %v645 = vadd.f32 0.0, %v644
          %v646 = vpop.f32.mrf.mxu0
          %v647 = vadd.f32 0.0, %v646
          %648 = vmatmul.bf16.gmra.mxu0 %v564
          %v649 = vpop.f32.mrf.mxu0
          %v650 = vadd.f32 0.0, %v649
          %v651 = vpop.f32.mrf.mxu0
          %v652 = vadd.f32 0.0, %v651
          %653 = vmatmul.bf16.gmra.mxu0 %v565
          %v654 = vpop.f32.mrf.mxu0
          %v655 = vadd.f32 0.0, %v654
          %v656 = vpop.f32.mrf.mxu0
          %v657 = vadd.f32 0.0, %v656
          %658 = vmatmul.bf16.gmra.mxu0 %v566
          %v659 = vpop.f32.mrf.mxu0
          %v660 = vadd.f32 0.0, %v659
          %v661 = vpop.f32.mrf.mxu0
          %v662 = vadd.f32 0.0, %v661
          %663 = vmatmul.bf16.gmra.mxu0 %v567
          %v664 = vpop.f32.mrf.mxu0
          %v665 = vadd.f32 0.0, %v664
          %v666 = vpop.f32.mrf.mxu0
          %v667 = vadd.f32 0.0, %v666
          %668 = vmatmul.bf16.gmra.mxu0 %v568
          %v669 = vpop.f32.mrf.mxu0
          %v670 = vadd.f32 0.0, %v669
          %v671 = vpop.f32.mrf.mxu0
          %v672 = vadd.f32 0.0, %v671
          %673 = vdwg.mxu0
          %v674 = vadd.f32 %v477, %v635
          %v675 = vadd.f32 %v478, %v637
          %v676 = vadd.f32 %v479, %v640
          %v677 = vadd.f32 %v480, %v642
          %v678 = vadd.f32 %v481, %v645
          %v679 = vadd.f32 %v482, %v647
          %v680 = vadd.f32 %v483, %v650
          %v681 = vadd.f32 %v484, %v652
          %v682 = vadd.f32 %v485, %v655
          %v683 = vadd.f32 %v486, %v657
          %v684 = vadd.f32 %v487, %v660
          %v685 = vadd.f32 %v488, %v662
          %v686 = vadd.f32 %v489, %v665
          %v687 = vadd.f32 %v490, %v667
          %v688 = vadd.f32 %v491, %v670
          %v689 = vadd.f32 %v492, %v672
          %690 = vst [vmem:[#allocation4] sm:$0xff] %v674
          %691 = vst [vmem:[#allocation4 + $0x8] sm:$0xff] %v675
          %692 = vst [vmem:[#allocation4 + $0x10] sm:$0xff] %v676
          %693 = vst [vmem:[#allocation4 + $0x18] sm:$0xff] %v677
          %694 = vst [vmem:[#allocation4 + $0x20] sm:$0xff] %v678
          %695 = vst [vmem:[#allocation4 + $0x28] sm:$0xff] %v679
          %696 = vst [vmem:[#allocation4 + $0x30] sm:$0xff] %v680
          %697 = vst [vmem:[#allocation4 + $0x38] sm:$0xff] %v681
          %698 = vst [vmem:[#allocation4 + $0x40] sm:$0xff] %v682
          %699 = vst [vmem:[#allocation4 + $0x48] sm:$0xff] %v683
          %700 = vst [vmem:[#allocation4 + $0x50] sm:$0xff] %v684
          %701 = vst [vmem:[#allocation4 + $0x58] sm:$0xff] %v685
          %702 = vst [vmem:[#allocation4 + $0x60] sm:$0xff] %v686
          %703 = vst [vmem:[#allocation4 + $0x68] sm:$0xff] %v687
          %704 = vst [vmem:[#allocation4 + $0x70] sm:$0xff] %v688
          %705 = vst [vmem:[#allocation4 + $0x78] sm:$0xff] %v689
        $region68: #{tpu_custom_call.1} parent=39 // pred_fallthru
          _
        %p706 = pnand %p386, %p472
        %p707 = pneg %p706
        // Predicated region
        $region69: #{tpu_custom_call.1} parent=39 // pred_check
          _
        $region70: #{tpu_custom_call.1} parent=39 // pred_check_branch
          %709 = sbr.rel (%p706) target = $region72
        $region71: #{tpu_custom_call.1} parent=39 // pred_region
          %v710 = vld [vmem:[%s369] sm:$0xff]
          %v711 = vld [vmem:[%s369 + $0x8] sm:$0xff]
          %v712 = vld [vmem:[%s369 + $0x10] sm:$0xff]
          %v713 = vld [vmem:[%s369 + $0x18] sm:$0xff]
          %v714 = vld [vmem:[%s369 + $0x20] sm:$0xff]
          %v715 = vld [vmem:[%s369 + $0x28] sm:$0xff]
          %v716 = vld [vmem:[%s369 + $0x30] sm:$0xff]
          %v717 = vld [vmem:[%s369 + $0x38] sm:$0xff]
          %v718 = vld [vmem:[%s369 + $0x40] sm:$0xff]
          %v719 = vld [vmem:[%s369 + $0x48] sm:$0xff]
          %v720 = vld [vmem:[%s369 + $0x50] sm:$0xff]
          %v721 = vld [vmem:[%s369 + $0x58] sm:$0xff]
          %v722 = vld [vmem:[%s369 + $0x60] sm:$0xff]
          %v723 = vld [vmem:[%s369 + $0x68] sm:$0xff]
          %v724 = vld [vmem:[%s369 + $0x70] sm:$0xff]
          %v725 = vld [vmem:[%s369 + $0x78] sm:$0xff]
          %v726 = vld [vmem:[%s322] sm:$0xf]
          %v727 = vld [vmem:[%s322 + $0x4] sm:$0xf]
          %v728 = vld [vmem:[%s322 + $0x8] sm:$0xf]
          %v729 = vld [vmem:[%s322 + $0xc] sm:$0xf]
          %v730 = vld [vmem:[%s322 + $0x10] sm:$0xf]
          %v731 = vld [vmem:[%s322 + $0x14] sm:$0xf]
          %v732 = vld [vmem:[%s322 + $0x18] sm:$0xf]
          %v733 = vld [vmem:[%s322 + $0x1c] sm:$0xf]
          %v734 = vld [vmem:[%s322 + $0x20] sm:$0xf]
          %v735 = vld [vmem:[%s322 + $0x24] sm:$0xf]
          %v736 = vld [vmem:[%s322 + $0x28] sm:$0xf]
          %v737 = vld [vmem:[%s322 + $0x2c] sm:$0xf]
          %v738 = vld [vmem:[%s322 + $0x30] sm:$0xf]
          %v739 = vld [vmem:[%s322 + $0x34] sm:$0xf]
          %v740 = vld [vmem:[%s322 + $0x38] sm:$0xf]
          %v741 = vld [vmem:[%s322 + $0x3c] sm:$0xf]
          %s742 = sshra.s32 %s383, 3
          %s743 = sand.u32 %s383, 7
          %s744 = smul.addr %s742, 4
          %s745 = scalar_lea.vmem [#allocation3], %s744
          %v746 = vld [vmem:[%s745] sm:$0xf]
          %v747 = vld [vmem:[%s745 + $0x4] sm:$0xf]
          %v748 = vld [vmem:[%s745 + $0x8] sm:$0xf]
          %v749 = vld [vmem:[%s745 + $0xc] sm:$0xf]
          %v750 = vld [vmem:[%s745 + $0x10] sm:$0xf]
          %v751 = vld [vmem:[%s745 + $0x14] sm:$0xf]
          %v752 = vld [vmem:[%s745 + $0x18] sm:$0xf]
          %v753 = vld [vmem:[%s745 + $0x1c] sm:$0xf]
          %v754 = vld [vmem:[%s745 + $0x20] sm:$0xf]
          %v755 = vld [vmem:[%s745 + $0x24] sm:$0xf]
          %v756 = vld [vmem:[%s745 + $0x28] sm:$0xf]
          %v757 = vld [vmem:[%s745 + $0x2c] sm:$0xf]
          %v758 = vld [vmem:[%s745 + $0x30] sm:$0xf]
          %v759 = vld [vmem:[%s745 + $0x34] sm:$0xf]
          %v760 = vld [vmem:[%s745 + $0x38] sm:$0xf]
          %v761 = vld [vmem:[%s745 + $0x3c] sm:$0xf]
          %v778 = vunpack.c.l.b16 %v726
          %v779 = vunpack.c.l.b16 %v727
          %v780 = vunpack.c.l.b16 %v728
          %v781 = vunpack.c.l.b16 %v729
          %v782 = vunpack.c.l.b16 %v730
          %v783 = vunpack.c.l.b16 %v731
          %v784 = vunpack.c.l.b16 %v732
          %v785 = vunpack.c.l.b16 %v733
          %v786 = vunpack.c.l.b16 %v734
          %v787 = vunpack.c.l.b16 %v735
          %v788 = vunpack.c.l.b16 %v736
          %v789 = vunpack.c.l.b16 %v737
          %v790 = vunpack.c.l.b16 %v738
          %v791 = vunpack.c.l.b16 %v739
          %v792 = vunpack.c.l.b16 %v740
          %v793 = vunpack.c.l.b16 %v741
          %v794 = vpack.c.b16 %v779, %v778
          %v795 = vpack.c.b16 %v781, %v780
          %v796 = vpack.c.b16 %v783, %v782
          %v797 = vpack.c.b16 %v785, %v784
          %v798 = vpack.c.b16 %v787, %v786
          %v799 = vpack.c.b16 %v789, %v788
          %v800 = vpack.c.b16 %v791, %v790
          %v801 = vpack.c.b16 %v793, %v792
          %v826 = vunpack.c.l.b16 %v746
          %v827 = vunpack.c.l.b16 %v747
          %v828 = vunpack.c.l.b16 %v748
          %v829 = vunpack.c.l.b16 %v749
          %v830 = vunpack.c.l.b16 %v750
          %v831 = vunpack.c.l.b16 %v751
          %v832 = vunpack.c.l.b16 %v752
          %v833 = vunpack.c.l.b16 %v753
          %v834 = vunpack.c.l.b16 %v754
          %v835 = vunpack.c.l.b16 %v755
          %v836 = vunpack.c.l.b16 %v756
          %v837 = vunpack.c.l.b16 %v757
          %v838 = vunpack.c.l.b16 %v758
          %v839 = vunpack.c.l.b16 %v759
          %v840 = vunpack.c.l.b16 %v760
          %v841 = vunpack.c.l.b16 %v761
          %v842 = vpack.c.b16 %v827, %v826
          %v843 = vpack.c.b16 %v829, %v828
          %v844 = vpack.c.b16 %v831, %v830
          %v845 = vpack.c.b16 %v833, %v832
          %v846 = vpack.c.b16 %v835, %v834
          %v847 = vpack.c.b16 %v837, %v836
          %v848 = vpack.c.b16 %v839, %v838
          %v849 = vpack.c.b16 %v841, %v840
          %858 = vmatpush.bf16.msra.mxu0 %v849
          %859 = vmatpush.bf16.msra.mxu0 %v848
          %860 = vmatpush.bf16.msra.mxu0 %v847
          %861 = vmatpush.bf16.msra.mxu0 %v846
          %862 = vmatpush.bf16.msra.mxu0 %v845
          %863 = vmatpush.bf16.msra.mxu0 %v844
          %864 = vmatpush.bf16.msra.mxu0 %v843
          %865 = vmatpush.bf16.msra.mxu0 %v842
          %866 = vmatmul.bf16.gmra.mxu0 %v794
          %v867 = vpop.f32.mrf.mxu0
          %v868 = vadd.f32 0.0, %v867
          %v869 = vpop.f32.mrf.mxu0
          %v870 = vadd.f32 0.0, %v869
          %871 = vmatmul.bf16.gmra.mxu0 %v795
          %v872 = vpop.f32.mrf.mxu0
          %v873 = vadd.f32 0.0, %v872
          %v874 = vpop.f32.mrf.mxu0
          %v875 = vadd.f32 0.0, %v874
          %876 = vmatmul.bf16.gmra.mxu0 %v796
          %v877 = vpop.f32.mrf.mxu0
          %v878 = vadd.f32 0.0, %v877
          %v879 = vpop.f32.mrf.mxu0
          %v880 = vadd.f32 0.0, %v879
          %881 = vmatmul.bf16.gmra.mxu0 %v797
          %v882 = vpop.f32.mrf.mxu0
          %v883 = vadd.f32 0.0, %v882
          %v884 = vpop.f32.mrf.mxu0
          %v885 = vadd.f32 0.0, %v884
          %886 = vmatmul.bf16.gmra.mxu0 %v798
          %v887 = vpop.f32.mrf.mxu0
          %v888 = vadd.f32 0.0, %v887
          %v889 = vpop.f32.mrf.mxu0
          %v890 = vadd.f32 0.0, %v889
          %891 = vmatmul.bf16.gmra.mxu0 %v799
          %v892 = vpop.f32.mrf.mxu0
          %v893 = vadd.f32 0.0, %v892
          %v894 = vpop.f32.mrf.mxu0
          %v895 = vadd.f32 0.0, %v894
          %896 = vmatmul.bf16.gmra.mxu0 %v800
          %v897 = vpop.f32.mrf.mxu0
          %v898 = vadd.f32 0.0, %v897
          %v899 = vpop.f32.mrf.mxu0
          %v900 = vadd.f32 0.0, %v899
          %901 = vmatmul.bf16.gmra.mxu0 %v801
          %v902 = vpop.f32.mrf.mxu0
          %v903 = vadd.f32 0.0, %v902
          %v904 = vpop.f32.mrf.mxu0
          %v905 = vadd.f32 0.0, %v904
          %906 = vdwg.mxu0
          %v907 = vadd.f32 %v710, %v868
          %v908 = vadd.f32 %v711, %v870
          %v909 = vadd.f32 %v712, %v873
          %v910 = vadd.f32 %v713, %v875
          %v911 = vadd.f32 %v714, %v878
          %v912 = vadd.f32 %v715, %v880
          %v913 = vadd.f32 %v716, %v883
          %v914 = vadd.f32 %v717, %v885
          %v915 = vadd.f32 %v718, %v888
          %v916 = vadd.f32 %v719, %v890
          %v917 = vadd.f32 %v720, %v893
          %v918 = vadd.f32 %v721, %v895
          %v919 = vadd.f32 %v722, %v898
          %v920 = vadd.f32 %v723, %v900
          %v921 = vadd.f32 %v724, %v903
          %v922 = vadd.f32 %v725, %v905
          %923 = vst [vmem:[%s369] sm:$0xff] %v907
          %924 = vst [vmem:[%s369 + $0x8] sm:$0xff] %v908
          %925 = vst [vmem:[%s369 + $0x10] sm:$0xff] %v909
          %926 = vst [vmem:[%s369 + $0x18] sm:$0xff] %v910
          %927 = vst [vmem:[%s369 + $0x20] sm:$0xff] %v911
          %928 = vst [vmem:[%s369 + $0x28] sm:$0xff] %v912
          %929 = vst [vmem:[%s369 + $0x30] sm:$0xff] %v913
          %930 = vst [vmem:[%s369 + $0x38] sm:$0xff] %v914
          %931 = vst [vmem:[%s369 + $0x40] sm:$0xff] %v915
          %932 = vst [vmem:[%s369 + $0x48] sm:$0xff] %v916
          %933 = vst [vmem:[%s369 + $0x50] sm:$0xff] %v917
          %934 = vst [vmem:[%s369 + $0x58] sm:$0xff] %v918
          %935 = vst [vmem:[%s369 + $0x60] sm:$0xff] %v919
          %936 = vst [vmem:[%s369 + $0x68] sm:$0xff] %v920
          %937 = vst [vmem:[%s369 + $0x70] sm:$0xff] %v921
          %938 = vst [vmem:[%s369 + $0x78] sm:$0xff] %v922
        $region72: #{tpu_custom_call.1} parent=39 // pred_fallthru
          _
        %p939 = scmp.eq.s32.totalorder %s47, 1
        %p940 = pnand %p385, %p939
        %p941 = pneg %p940
        // Predicated region
        $region73: #{tpu_custom_call.1} parent=39 // pred_check
          _
        $region74: #{tpu_custom_call.1} parent=39 // pred_check_branch
          %943 = sbr.rel (%p940) target = $region76
        $region75: #{tpu_custom_call.1} parent=39 // pred_region
          %v944 = vld [vmem:[#allocation4] sm:$0xff]
          %v945 = vld [vmem:[#allocation4 + $0x8] sm:$0xff]
          %v946 = vld [vmem:[#allocation4 + $0x10] sm:$0xff]
          %v947 = vld [vmem:[#allocation4 + $0x18] sm:$0xff]
          %v948 = vld [vmem:[#allocation4 + $0x20] sm:$0xff]
          %v949 = vld [vmem:[#allocation4 + $0x28] sm:$0xff]
          %v950 = vld [vmem:[#allocation4 + $0x30] sm:$0xff]
          %v951 = vld [vmem:[#allocation4 + $0x38] sm:$0xff]
          %v952 = vld [vmem:[#allocation4 + $0x40] sm:$0xff]
          %v953 = vld [vmem:[#allocation4 + $0x48] sm:$0xff]
          %v954 = vld [vmem:[#allocation4 + $0x50] sm:$0xff]
          %v955 = vld [vmem:[#allocation4 + $0x58] sm:$0xff]
          %v956 = vld [vmem:[#allocation4 + $0x60] sm:$0xff]
          %v957 = vld [vmem:[#allocation4 + $0x68] sm:$0xff]
          %v958 = vld [vmem:[#allocation4 + $0x70] sm:$0xff]
          %v959 = vld [vmem:[#allocation4 + $0x78] sm:$0xff]
          %v960 = vld [vmem:[%s4] sm:$0x1]
          %v962 = vperm.slane %v960, 0
          %v964 = vadd.f32 %v944, %v962
          %v965 = vadd.f32 %v945, %v962
          %v966 = vadd.f32 %v946, %v962
          %v967 = vadd.f32 %v947, %v962
          %v968 = vadd.f32 %v948, %v962
          %v969 = vadd.f32 %v949, %v962
          %v970 = vadd.f32 %v950, %v962
          %v971 = vadd.f32 %v951, %v962
          %v972 = vadd.f32 %v952, %v962
          %v973 = vadd.f32 %v953, %v962
          %v974 = vadd.f32 %v954, %v962
          %v975 = vadd.f32 %v955, %v962
          %v976 = vadd.f32 %v956, %v962
          %v977 = vadd.f32 %v957, %v962
          %v978 = vadd.f32 %v958, %v962
          %v979 = vadd.f32 %v959, %v962
          %v980 = vmax.f32 %v964, 0.0
          %v981 = vmax.f32 %v965, 0.0
          %v982 = vmax.f32 %v966, 0.0
          %v983 = vmax.f32 %v967, 0.0
          %v984 = vmax.f32 %v968, 0.0
          %v985 = vmax.f32 %v969, 0.0
          %v986 = vmax.f32 %v970, 0.0
          %v987 = vmax.f32 %v971, 0.0
          %v988 = vmax.f32 %v972, 0.0
          %v989 = vmax.f32 %v973, 0.0
          %v990 = vmax.f32 %v974, 0.0
          %v991 = vmax.f32 %v975, 0.0
          %v992 = vmax.f32 %v976, 0.0
          %v993 = vmax.f32 %v977, 0.0
          %v994 = vmax.f32 %v978, 0.0
          %v995 = vmax.f32 %v979, 0.0
          %v996 = vpack.c.bf16 %v981, %v980
          %v997 = vpack.c.bf16 %v983, %v982
          %v998 = vpack.c.bf16 %v985, %v984
          %v999 = vpack.c.bf16 %v987, %v986
          %v1000 = vpack.c.bf16 %v989, %v988
          %v1001 = vpack.c.bf16 %v991, %v990
          %v1002 = vpack.c.bf16 %v993, %v992
          %v1003 = vpack.c.bf16 %v995, %v994
          %v1004 = vld [vmem:[#allocation13] sm:$0xf]
          %v1005 = vld [vmem:[#allocation13 + $0x4] sm:$0xf]
          %v1006 = vld [vmem:[#allocation13 + $0x8] sm:$0xf]
          %v1007 = vld [vmem:[#allocation13 + $0xc] sm:$0xf]
          %v1008 = vld [vmem:[#allocation13 + $0x10] sm:$0xf]
          %v1009 = vld [vmem:[#allocation13 + $0x14] sm:$0xf]
          %v1010 = vld [vmem:[#allocation13 + $0x18] sm:$0xf]
          %v1011 = vld [vmem:[#allocation13 + $0x1c] sm:$0xf]
          %v1012 = vld [vmem:[#allocation13 + $0x20] sm:$0xf]
          %v1013 = vld [vmem:[#allocation13 + $0x24] sm:$0xf]
          %v1014 = vld [vmem:[#allocation13 + $0x28] sm:$0xf]
          %v1015 = vld [vmem:[#allocation13 + $0x2c] sm:$0xf]
          %v1016 = vld [vmem:[#allocation13 + $0x30] sm:$0xf]
          %v1017 = vld [vmem:[#allocation13 + $0x34] sm:$0xf]
          %v1018 = vld [vmem:[#allocation13 + $0x38] sm:$0xf]
          %v1019 = vld [vmem:[#allocation13 + $0x3c] sm:$0xf]
          %v1036 = vunpack.c.l.b16 %v1004
          %v1037 = vunpack.c.l.b16 %v1005
          %v1038 = vunpack.c.l.b16 %v1006
          %v1039 = vunpack.c.l.b16 %v1007
          %v1040 = vunpack.c.l.b16 %v1008
          %v1041 = vunpack.c.l.b16 %v1009
          %v1042 = vunpack.c.l.b16 %v1010
          %v1043 = vunpack.c.l.b16 %v1011
          %v1044 = vunpack.c.l.b16 %v1012
          %v1045 = vunpack.c.l.b16 %v1013
          %v1046 = vunpack.c.l.b16 %v1014
          %v1047 = vunpack.c.l.b16 %v1015
          %v1048 = vunpack.c.l.b16 %v1016
          %v1049 = vunpack.c.l.b16 %v1017
          %v1050 = vunpack.c.l.b16 %v1018
          %v1051 = vunpack.c.l.b16 %v1019
          %v1052 = vpack.c.b16 %v1037, %v1036
          %v1053 = vpack.c.b16 %v1039, %v1038
          %v1054 = vpack.c.b16 %v1041, %v1040
          %v1055 = vpack.c.b16 %v1043, %v1042
          %v1056 = vpack.c.b16 %v1045, %v1044
          %v1057 = vpack.c.b16 %v1047, %v1046
          %v1058 = vpack.c.b16 %v1049, %v1048
          %v1059 = vpack.c.b16 %v1051, %v1050
          %1068 = vmatpush.bf16.msra.mxu0 %v1059
          %1069 = vmatpush.bf16.msra.mxu0 %v1058
          %1070 = vmatpush.bf16.msra.mxu0 %v1057
          %1071 = vmatpush.bf16.msra.mxu0 %v1056
          %1072 = vmatpush.bf16.msra.mxu0 %v1055
          %1073 = vmatpush.bf16.msra.mxu0 %v1054
          %1074 = vmatpush.bf16.msra.mxu0 %v1053
          %1075 = vmatpush.bf16.msra.mxu0 %v1052
          %1076 = vmatmul.bf16.gmra.mxu0 %v996
          %v1077 = vpop.f32.mrf.mxu0
          %v1078 = vadd.f32 0.0, %v1077
          %v1079 = vpop.f32.mrf.mxu0
          %v1080 = vadd.f32 0.0, %v1079
          %1081 = vmatmul.bf16.gmra.mxu0 %v997
          %v1082 = vpop.f32.mrf.mxu0
          %v1083 = vadd.f32 0.0, %v1082
          %v1084 = vpop.f32.mrf.mxu0
          %v1085 = vadd.f32 0.0, %v1084
          %1086 = vmatmul.bf16.gmra.mxu0 %v998
          %v1087 = vpop.f32.mrf.mxu0
          %v1088 = vadd.f32 0.0, %v1087
          %v1089 = vpop.f32.mrf.mxu0
          %v1090 = vadd.f32 0.0, %v1089
          %1091 = vmatmul.bf16.gmra.mxu0 %v999
          %v1092 = vpop.f32.mrf.mxu0
          %v1093 = vadd.f32 0.0, %v1092
          %v1094 = vpop.f32.mrf.mxu0
          %v1095 = vadd.f32 0.0, %v1094
          %1096 = vmatmul.bf16.gmra.mxu0 %v1000
          %v1097 = vpop.f32.mrf.mxu0
          %v1098 = vadd.f32 0.0, %v1097
          %v1099 = vpop.f32.mrf.mxu0
          %v1100 = vadd.f32 0.0, %v1099
          %1101 = vmatmul.bf16.gmra.mxu0 %v1001
          %v1102 = vpop.f32.mrf.mxu0
          %v1103 = vadd.f32 0.0, %v1102
          %v1104 = vpop.f32.mrf.mxu0
          %v1105 = vadd.f32 0.0, %v1104
          %1106 = vmatmul.bf16.gmra.mxu0 %v1002
          %v1107 = vpop.f32.mrf.mxu0
          %v1108 = vadd.f32 0.0, %v1107
          %v1109 = vpop.f32.mrf.mxu0
          %v1110 = vadd.f32 0.0, %v1109
          %1111 = vmatmul.bf16.gmra.mxu0 %v1003
          %v1112 = vpop.f32.mrf.mxu0
          %v1113 = vadd.f32 0.0, %v1112
          %v1114 = vpop.f32.mrf.mxu0
          %v1115 = vadd.f32 0.0, %v1114
          %1116 = vdwg.mxu0
          %v1117 = vpack.c.bf16 %v1078, %v1078
          %v1118 = vpack.c.bf16 %v1080, %v1080
          %v1119 = vpack.c.bf16 %v1083, %v1083
          %v1120 = vpack.c.bf16 %v1085, %v1085
          %v1121 = vpack.c.bf16 %v1088, %v1088
          %v1122 = vpack.c.bf16 %v1090, %v1090
          %v1123 = vpack.c.bf16 %v1093, %v1093
          %v1124 = vpack.c.bf16 %v1095, %v1095
          %v1125 = vpack.c.bf16 %v1098, %v1098
          %v1126 = vpack.c.bf16 %v1100, %v1100
          %v1127 = vpack.c.bf16 %v1103, %v1103
          %v1128 = vpack.c.bf16 %v1105, %v1105
          %v1129 = vpack.c.bf16 %v1108, %v1108
          %v1130 = vpack.c.bf16 %v1110, %v1110
          %v1131 = vpack.c.bf16 %v1113, %v1113
          %v1132 = vpack.c.bf16 %v1115, %v1115
          %s1133 = sshra.s32 %s384, 3
          %s1134 = sand.u32 %s384, 7
          %s1135 = smul.addr %s1133, 4
          %s1136 = scalar_lea.vmem [#allocation3], %s1135
          %1137 = vst [vmem:[%s1136] sm:$0xf] %v1117
          %1138 = vst [vmem:[%s1136 + $0x4] sm:$0xf] %v1118
          %1139 = vst [vmem:[%s1136 + $0x8] sm:$0xf] %v1119
          %1140 = vst [vmem:[%s1136 + $0xc] sm:$0xf] %v1120
          %1141 = vst [vmem:[%s1136 + $0x10] sm:$0xf] %v1121
          %1142 = vst [vmem:[%s1136 + $0x14] sm:$0xf] %v1122
          %1143 = vst [vmem:[%s1136 + $0x18] sm:$0xf] %v1123
          %1144 = vst [vmem:[%s1136 + $0x1c] sm:$0xf] %v1124
          %1145 = vst [vmem:[%s1136 + $0x20] sm:$0xf] %v1125
          %1146 = vst [vmem:[%s1136 + $0x24] sm:$0xf] %v1126
          %1147 = vst [vmem:[%s1136 + $0x28] sm:$0xf] %v1127
          %1148 = vst [vmem:[%s1136 + $0x2c] sm:$0xf] %v1128
          %1149 = vst [vmem:[%s1136 + $0x30] sm:$0xf] %v1129
          %1150 = vst [vmem:[%s1136 + $0x34] sm:$0xf] %v1130
          %1151 = vst [vmem:[%s1136 + $0x38] sm:$0xf] %v1131
          %1152 = vst [vmem:[%s1136 + $0x3c] sm:$0xf] %v1132
        $region76: #{tpu_custom_call.1} parent=39 // pred_fallthru
          _
        %p1153 = pnand %p386, %p939
        %p1154 = pneg %p1153
        // Predicated region
        $region77: #{tpu_custom_call.1} parent=39 // pred_check
          _
        $region78: #{tpu_custom_call.1} parent=39 // pred_check_branch
          %1156 = sbr.rel (%p1153) target = $region80
        $region79: #{tpu_custom_call.1} parent=39 // pred_region
          %v1157 = vld [vmem:[%s369] sm:$0xff]
          %v1158 = vld [vmem:[%s369 + $0x8] sm:$0xff]
          %v1159 = vld [vmem:[%s369 + $0x10] sm:$0xff]
          %v1160 = vld [vmem:[%s369 + $0x18] sm:$0xff]
          %v1161 = vld [vmem:[%s369 + $0x20] sm:$0xff]
          %v1162 = vld [vmem:[%s369 + $0x28] sm:$0xff]
          %v1163 = vld [vmem:[%s369 + $0x30] sm:$0xff]
          %v1164 = vld [vmem:[%s369 + $0x38] sm:$0xff]
          %v1165 = vld [vmem:[%s369 + $0x40] sm:$0xff]
          %v1166 = vld [vmem:[%s369 + $0x48] sm:$0xff]
          %v1167 = vld [vmem:[%s369 + $0x50] sm:$0xff]
          %v1168 = vld [vmem:[%s369 + $0x58] sm:$0xff]
          %v1169 = vld [vmem:[%s369 + $0x60] sm:$0xff]
          %v1170 = vld [vmem:[%s369 + $0x68] sm:$0xff]
          %v1171 = vld [vmem:[%s369 + $0x70] sm:$0xff]
          %v1172 = vld [vmem:[%s369 + $0x78] sm:$0xff]
          %v1173 = vld [vmem:[%s6] sm:$0x1]
          %v1175 = vperm.slane %v1173, 0
          %v1177 = vadd.f32 %v1157, %v1175
          %v1178 = vadd.f32 %v1158, %v1175
          %v1179 = vadd.f32 %v1159, %v1175
          %v1180 = vadd.f32 %v1160, %v1175
          %v1181 = vadd.f32 %v1161, %v1175
          %v1182 = vadd.f32 %v1162, %v1175
          %v1183 = vadd.f32 %v1163, %v1175
          %v1184 = vadd.f32 %v1164, %v1175
          %v1185 = vadd.f32 %v1165, %v1175
          %v1186 = vadd.f32 %v1166, %v1175
          %v1187 = vadd.f32 %v1167, %v1175
          %v1188 = vadd.f32 %v1168, %v1175
          %v1189 = vadd.f32 %v1169, %v1175
          %v1190 = vadd.f32 %v1170, %v1175
          %v1191 = vadd.f32 %v1171, %v1175
          %v1192 = vadd.f32 %v1172, %v1175
          %1193 = vst [vmem:[%s369] sm:$0xff] %v1177
          %1194 = vst [vmem:[%s369 + $0x8] sm:$0xff] %v1178
          %1195 = vst [vmem:[%s369 + $0x10] sm:$0xff] %v1179
          %1196 = vst [vmem:[%s369 + $0x18] sm:$0xff] %v1180
          %1197 = vst [vmem:[%s369 + $0x20] sm:$0xff] %v1181
          %1198 = vst [vmem:[%s369 + $0x28] sm:$0xff] %v1182
          %1199 = vst [vmem:[%s369 + $0x30] sm:$0xff] %v1183
          %1200 = vst [vmem:[%s369 + $0x38] sm:$0xff] %v1184
          %1201 = vst [vmem:[%s369 + $0x40] sm:$0xff] %v1185
          %1202 = vst [vmem:[%s369 + $0x48] sm:$0xff] %v1186
          %1203 = vst [vmem:[%s369 + $0x50] sm:$0xff] %v1187
          %1204 = vst [vmem:[%s369 + $0x58] sm:$0xff] %v1188
          %1205 = vst [vmem:[%s369 + $0x60] sm:$0xff] %v1189
          %1206 = vst [vmem:[%s369 + $0x68] sm:$0xff] %v1190
          %1207 = vst [vmem:[%s369 + $0x70] sm:$0xff] %v1191
          %1208 = vst [vmem:[%s369 + $0x78] sm:$0xff] %v1192
        $region80: #{tpu_custom_call.1} parent=39 // pred_fallthru
          _
        %s1209 = sand.u32 %s204, 1
        %s1210 = scalar_lea.sflag [#allocation10], %s1209
        %s1211 = sand.u32 %s204, 1
        %s1212 = smul.addr %s1211, 128
        %s1213 = scalar_lea.vmem [#allocation14], %s1212
        // Predicated region
        $region81: #{tpu_custom_call.1} parent=39 // pred_check
          %p1214 = pneg %p214
        $region82: #{tpu_custom_call.1} parent=39 // pred_check_branch
          %1216 = sbr.rel (%p1214) target = $region84
        $region83: #{tpu_custom_call.1} parent=39 // pred_region
          %s1217 = smul.u32 %s46, %s45
          %s1218 = smul.u32 16, %s1217
          %1220 = vsyncadd %s1210, 0
          %s1221 = smul.addr %s1218, 8
          %s1222 = scalar_lea.hbm %s7, %s1221
          %s1223 = sshll.u32 %s1213, 4
          %s1224 = int_to_ptr.vmem [resolvable:$true] %s1223
          %s1225 = sshll.u32 %s1222, 4
          %s1226 = int_to_ptr.hbm [resolvable:$true] %s1225
          %1231 = dma.vmem_to_hbm [thread:$0]  %s1224, 2048, %s1226, %s1210, 128, 128, 8
        $region84: #{tpu_custom_call.1} parent=39 // pred_fallthru
          _
      $region40: #{tpu_custom_call.1} parent=5 // pred_fallthru
        _
      %p1232 = scmp.le.s32.totalorder 2, %s35
      // Predicated region
      $region85: #{tpu_custom_call.1} parent=5 // pred_check
        %p1233 = pneg %p1232
      $region86: #{tpu_custom_call.1} parent=5 // pred_check_branch
        %1235 = sbr.rel (%p1233) target = $region88
      $region87: #{tpu_custom_call.1} parent=5 // pred_region
        %s1236 = ssub.s32 %s35, 2
        // Predicated region
        $region89: #{tpu_custom_call.1} parent=87 // pred_check
          %p1237 = pneg %p220
        $region90: #{tpu_custom_call.1} parent=87 // pred_check_branch
          %1239 = sbr.rel (%p1237) target = $region92
        $region91: #{tpu_custom_call.1} parent=87 // pred_region
          %s1240 = sand.u32 %s205, 1
          %s1241 = scalar_lea.sflag [#allocation10], %s1240
          %s1242 = sand.u32 %s205, 1
          %s1243 = smul.addr %s1242, 128
          %s1244 = scalar_lea.vmem [#allocation14], %s1243
          %1246 = dma.done %s1241, 2048
        $region92: #{tpu_custom_call.1} parent=87 // pred_fallthru
          _
      $region88: #{tpu_custom_call.1} parent=5 // pred_fallthru
        _
    $region6: #{tpu_custom_call.1} parent=1 // loop_footer
      %s39 = sadd.s32 1, %s35
    $region7: #{tpu_custom_call.1} parent=1 // loop_footer_branch
      %34 = sbr.rel target = $region3
    $region8: #{tpu_custom_call.1} parent=1 // loop_exit
      _
    %1247 = vsyncpa [#allocation9], 1
    %s1248 = scalar_lea.sflag [#allocation9], 1
    %1249 = vsyncpa %s1248, 1
    %1250 = vsyncpa [#allocation12], 1
    %s1251 = scalar_lea.sflag [#allocation12], 1
    %1252 = vsyncpa %s1251, 1
    %1253 = vsyncpa [#allocation10], 1
    %s1254 = scalar_lea.sflag [#allocation10], 1
    %1255 = vsyncpa %s1254, 1

</llo_original>
